<compile_context>
chip_gen: v7x
topology: tpu7x:2x2x1
jax: 0.10.0
libtpu: 0.0.40
codegen_flags: <defaults>
</compile_context>

<pallas_src>
import functools

import numpy as np
import jax
import jax.numpy as jnp
from jax.experimental import pallas as pl
from jax.experimental.pallas import tpu as pltpu


# ---------------------------------------------------------------------------
# Pallas kernel: one grid step processes TN (batch*channel) slices.
#   per slice t:
#     u_phi = w_phi @ a_t                  (1,   K2) @ (K2, P) -> (1,   P)  [MXU]
#     u_psi = | w_psi @ a_t |              (F-1, K2) @ (K2, P) -> (F-1, P)  [MXU+VPU]
#     s_*   = u_* @ pool_T                 (.,   P ) @ (P, Pout)            [MXU]
#   spatial dims (P, Pout) live in the lane dimension -> lane-dense stores.
# ---------------------------------------------------------------------------
def _scattering_kernel(patch_ref, wphi_ref, wpsi_ref, pool_ref, out_ref,
                       *, tn, p, pout, f):
    w_phi = wphi_ref[...]                    # (1,   K2) bf16
    w_psi = wpsi_ref[...]                    # (F-1, K2) bf16
    pool_t = pool_ref[...]                   # (P, Pout) f32

    for t in range(tn):                      # static Python loop (unrolled)
        a_t = patch_ref[0, :, t * p:(t + 1) * p]                  # (K2, P) bf16
        u_phi = jnp.dot(w_phi, a_t, preferred_element_type=jnp.float32)      # (1, P)
        u_psi = jnp.abs(
            jnp.dot(w_psi, a_t, preferred_element_type=jnp.float32))         # (F-1, P)
        s_phi = jnp.dot(u_phi, pool_t, preferred_element_type=jnp.float32)   # (1, Pout)
        s_psi = jnp.dot(u_psi, pool_t, preferred_element_type=jnp.float32)   # (F-1, Pout)
        out_ref[0, 0:1, t * pout:(t + 1) * pout] = s_phi.astype(out_ref.dtype)
        out_ref[0, 1:f, t * pout:(t + 1) * pout] = s_psi.astype(out_ref.dtype)


# ---------------------------------------------------------------------------
# Host-side glue: deterministic filters, pooling matrix, circular im2col.
# ---------------------------------------------------------------------------
def _build_filters(J, L, K):
    """Deterministic real Morlet-like filter bank, shape (K*K, 1 + J*L), f32."""
    off = K // 2
    u = np.arange(-off, off + 1, dtype=np.float64)
    uu, vv = np.meshgrid(u, u, indexing="ij")
    filters = []
    sigma_phi = 0.8 * (2 ** J)
    phi = np.exp(-(uu ** 2 + vv ** 2) / (2.0 * sigma_phi ** 2))
    phi = phi / phi.sum()
    filters.append(phi)
    for j in range(J):
        sigma = 0.8 * (2 ** j)
        xi = (3.0 * np.pi / 4.0) / (2 ** j)
        for l in range(L):
            theta = np.pi * l / L
            carrier = np.cos(xi * (uu * np.cos(theta) + vv * np.sin(theta)))
            env = np.exp(-(uu ** 2 + vv ** 2) / (2.0 * sigma ** 2))
            psi = env * carrier
            psi = psi - psi.mean()
            psi = psi / (np.abs(psi).sum() + 1e-12)
            filters.append(psi)
    bank = np.stack(filters, axis=-1).reshape(K * K, -1)       # (K2, F)
    return jnp.asarray(bank, dtype=jnp.float32)


def _build_pool_matrix_t(H, W, J):
    """Transposed block-average pooling matrix, shape (P, Pout) = (HW, HoWo)."""
    s = 2 ** J
    Ho, Wo = H // s, W // s
    q = (np.arange(H)[:, None] // s) * Wo + (np.arange(W)[None, :] // s)   # (H, W)
    M = np.zeros((H * W, Ho * Wo), dtype=np.float32)
    M[np.arange(H * W), q.reshape(-1)] = 1.0 / (s * s)
    return jnp.asarray(M)


def _im2col_circular(x, K):
    """x: (B, C, H, W) -> patches (B*C, K*K, H*W) bf16, periodic boundary."""
    B, C, H, W = x.shape
    off = K // 2
    cols = []
    for ky in range(K):
        for kx in range(K):
            cols.append(jnp.roll(x, shift=(off - ky, off - kx), axis=(2, 3)))
    patches = jnp.stack(cols, axis=2)                          # (B, C, K2, H, W)
    return patches.reshape(B * C, K * K, H * W).astype(jnp.bfloat16)


def _pick_tn(n, k2, p, bytes_per_elem=2, budget=8 * 1024 * 1024):
    """Largest TN dividing N such that the grid keeps >= 2 steps (megacore on
    v7x) and the double-buffered patch tile fits a conservative VMEM budget
    (sized with v7x's 64 MiB physical VMEM in mind)."""
    best = 1
    for tn in range(1, n + 1):
        if n % tn:
            continue
        if n // tn < 2 and n > 1:
            continue
        if 2 * tn * k2 * p * bytes_per_elem > budget:
            continue
        best = tn
    return best


def scattering_forward(x, J=2, L=4, K=7):
    """Simplified 2D scattering forward.  x: (B, C, H, W) float32 (NCHW).

    Returns (B, C, 1 + J*L, H // 2**J, W // 2**J) float32.
    """
    B, C, H, W = x.shape
    s = 2 ** J
    assert H % s == 0 and W % s == 0, "spatial dims must be divisible by 2**J"
    Ho, Wo = H // s, W // s
    N = B * C
    P = H * W
    Pout = Ho * Wo
    K2 = K * K
    F = 1 + J * L

    bank = _build_filters(J, L, K)                              # (K2, F) f32
    w_phi = bank[:, 0:1].T.astype(jnp.bfloat16)                 # (1, K2)
    w_psi = bank[:, 1:].T.astype(jnp.bfloat16)                  # (F-1, K2)
    pool_t = _build_pool_matrix_t(H, W, J)                      # (P, Pout) f32
    patches = _im2col_circular(x.astype(jnp.float32), K)        # (N, K2, P) bf16

    TN = _pick_tn(N, K2, P)
    G = N // TN
    TP = TN * P
    TPout = TN * Pout

    # (N, K2, P) -> (G, K2, TN*P): spatial/slice dims packed into lanes.
    patches = patches.reshape(G, TN, K2, P).transpose(0, 2, 1, 3).reshape(G, K2, TP)

    kernel = functools.partial(_scattering_kernel, tn=TN, p=P, pout=Pout, f=F)

    out = pl.pallas_call(
        kernel,
        out_shape=jax.ShapeDtypeStruct((G, F, TPout), jnp.float32),
        grid_spec=pltpu.PrefetchScalarGridSpec(
            num_scalar_prefetch=0,
            grid=(G,),
            in_specs=[
                pl.BlockSpec((1, K2, TP), lambda g: (g, 0, 0)),
                pl.BlockSpec((1, K2), lambda g: (0, 0)),
                pl.BlockSpec((F - 1, K2), lambda g: (0, 0)),
                pl.BlockSpec((P, Pout), lambda g: (0, 0)),
            ],
            out_specs=pl.BlockSpec((1, F, TPout), lambda g: (g, 0, 0)),
        ),
        compiler_params=pltpu.CompilerParams(
            dimension_semantics=("parallel",),
            vmem_limit_bytes=32 * 1024 * 1024,
        ),
    )(patches, w_phi, w_psi, pool_t)

    # (G, F, TN*Pout) -> (N, F, Pout) -> (B, C, F, Ho, Wo); tiny glue reshape.
    out = out.reshape(G, F, TN, Pout).transpose(0, 2, 1, 3)
    return out.reshape(B, C, F, Ho, Wo)


# ---------------------------------------------------------------------------
# Plain-JAX reference (same bf16-rounded operands, f32 accumulation).
# ---------------------------------------------------------------------------
def _reference(x, J=2, L=4, K=7):
    B, C, H, W = x.shape
    bank = _build_filters(J, L, K)                              # (K2, F)
    pool_t = _build_pool_matrix_t(H, W, J)                      # (P, Pout)
    patches = _im2col_circular(x.astype(jnp.float32), K)        # (N, K2, P) bf16
    w = bank.T.astype(jnp.bfloat16).astype(jnp.float32)         # (F, K2)
    patches = patches.astype(jnp.float32)
    u = jnp.einsum("fk,nkp->nfp", w, patches,
                   precision=jax.lax.Precision.HIGHEST)         # (N, F, P)
    u = u.at[:, 1:, :].set(jnp.abs(u[:, 1:, :]))
    s_out = jnp.einsum("nfp,pq->nfq", u, pool_t,
                       precision=jax.lax.Precision.HIGHEST)     # (N, F, Pout)
    F = bank.shape[1]
    Ho, Wo = H // 2 ** J, W // 2 ** J
    return s_out.reshape(B, C, F, Ho, Wo)


if __name__ == "__main__":
    key = jax.random.PRNGKey(0)
    B, C, H, W = 2, 4, 16, 16
    J, L, K = 2, 4, 7
    x = jax.random.normal(key, (B, C, H, W), dtype=jnp.float32)

    out = scattering_forward(x, J=J, L=L, K=K)
    out = jax.block_until_ready(out)

    ref = _reference(x, J=J, L=L, K=K)
    assert out.shape == (B, C, 1 + J * L, H // 2 ** J, W // 2 ** J), out.shape
    np.testing.assert_allclose(np.asarray(out), np.asarray(ref), rtol=1e-2, atol=1e-3)

    print("KERNEL_OK")
</pallas_src>

<mosaic_0001>
module attributes {stable_mosaic.version = 11 : i64} {
  func.func @_scattering_kernel(%arg0: i32, %arg1: memref<1x49x1024xbf16, #tpu.memory_space<vmem>>, %arg2: memref<1x49xbf16, #tpu.memory_space<vmem>>, %arg3: memref<8x49xbf16, #tpu.memory_space<vmem>>, %arg4: memref<256x16xf32, #tpu.memory_space<vmem>>, %arg5: memref<1x9x64xf32, #tpu.memory_space<vmem>>) attributes {dimension_semantics = [#tpu.dimension_semantics<parallel>], iteration_bounds = array<i64: 2>, scalar_prefetch = 0 : i64, scratch_operands = 0 : i64, tpu.core_type = #tpu.core_type<tc>, window_params = [{transform_indices = @transform_0, window_bounds = array<i64: 1, 49, 1024>}, {pipeline_mode = #tpu.pipeline_mode<synchronous>, transform_indices = @transform_1, window_bounds = array<i64: 1, 49>}, {pipeline_mode = #tpu.pipeline_mode<synchronous>, transform_indices = @transform_2, window_bounds = array<i64: 8, 49>}, {pipeline_mode = #tpu.pipeline_mode<synchronous>, transform_indices = @transform_3, window_bounds = array<i64: 256, 16>}, {transform_indices = @transform_4, window_bounds = array<i64: 1, 9, 64>}]} {
    %c0 = arith.constant 0 : index
    %c0_0 = arith.constant 0 : index
    %0 = vector.load %arg2[%c0, %c0_0] : memref<1x49xbf16, #tpu.memory_space<vmem>>, vector<1x49xbf16>
    %c0_1 = arith.constant 0 : index
    %c0_2 = arith.constant 0 : index
    %1 = vector.load %arg3[%c0_1, %c0_2] : memref<8x49xbf16, #tpu.memory_space<vmem>>, vector<8x49xbf16>
    %c0_3 = arith.constant 0 : index
    %c0_4 = arith.constant 0 : index
    %2 = vector.load %arg4[%c0_3, %c0_4] : memref<256x16xf32, #tpu.memory_space<vmem>>, vector<256x16xf32>
    %c0_5 = arith.constant 0 : index
    %c0_6 = arith.constant 0 : index
    %c0_7 = arith.constant 0 : index
    %3 = vector.load %arg1[%c0_5, %c0_6, %c0_7] : memref<1x49x1024xbf16, #tpu.memory_space<vmem>>, vector<1x49x256xbf16>
    %4 = vector.shape_cast %3 : vector<1x49x256xbf16> to vector<49x256xbf16>
    %cst = arith.constant dense<0.000000e+00> : vector<1x256xf32>
    %5 = tpu.matmul %0, %4, %cst {dimension_numbers = #tpu.dot_dimension_numbers<[1], [0], [0], [1], [0, 0, 1, 1], [], []>} : vector<1x49xbf16>, vector<49x256xbf16>, vector<1x256xf32> -> vector<1x256xf32>
    %cst_8 = arith.constant dense<0.000000e+00> : vector<8x256xf32>
    %6 = tpu.matmul %1, %4, %cst_8 {dimension_numbers = #tpu.dot_dimension_numbers<[1], [0], [0], [1], [0, 0, 1, 1], [], []>} : vector<8x49xbf16>, vector<49x256xbf16>, vector<8x256xf32> -> vector<8x256xf32>
    %7 = math.absf %6 : vector<8x256xf32>
    %cst_9 = arith.constant dense<0.000000e+00> : vector<1x16xf32>
    %8 = tpu.matmul %5, %2, %cst_9 {dimension_numbers = #tpu.dot_dimension_numbers<[1], [0], [0], [1], [0, 0, 1, 1], [], []>} : vector<1x256xf32>, vector<256x16xf32>, vector<1x16xf32> -> vector<1x16xf32>
    %cst_10 = arith.constant dense<0.000000e+00> : vector<8x16xf32>
    %9 = tpu.matmul %7, %2, %cst_10 {dimension_numbers = #tpu.dot_dimension_numbers<[1], [0], [0], [1], [0, 0, 1, 1], [], []>} : vector<8x256xf32>, vector<256x16xf32>, vector<8x16xf32> -> vector<8x16xf32>
    %c0_11 = arith.constant 0 : index
    %c0_12 = arith.constant 0 : index
    %c0_13 = arith.constant 0 : index
    %10 = vector.load %arg5[%c0_11, %c0_12, %c0_13] : memref<1x9x64xf32, #tpu.memory_space<vmem>>, vector<1x1x16xf32>
    %11 = vector.shape_cast %10 : vector<1x1x16xf32> to vector<1x16xf32>
    %12 = vector.shape_cast %8 : vector<1x16xf32> to vector<1x1x16xf32>
    tpu.vector_store %arg5[%c0_11, %c0_12, %c0_13], %12 {strides = array<i32>} : memref<1x9x64xf32, #tpu.memory_space<vmem>>, vector<1x1x16xf32>,
    %c0_14 = arith.constant 0 : index
    %c1 = arith.constant 1 : index
    %c0_15 = arith.constant 0 : index
    %13 = vector.load %arg5[%c0_14, %c1, %c0_15] : memref<1x9x64xf32, #tpu.memory_space<vmem>>, vector<1x8x16xf32>
    %14 = vector.shape_cast %13 : vector<1x8x16xf32> to vector<8x16xf32>
    %15 = vector.shape_cast %9 : vector<8x16xf32> to vector<1x8x16xf32>
    tpu.vector_store %arg5[%c0_14, %c1, %c0_15], %15 {strides = array<i32>} : memref<1x9x64xf32, #tpu.memory_space<vmem>>, vector<1x8x16xf32>,
    %c0_16 = arith.constant 0 : index
    %c0_17 = arith.constant 0 : index
    %c256 = arith.constant 256 : index
    %16 = vector.load %arg1[%c0_16, %c0_17, %c256] : memref<1x49x1024xbf16, #tpu.memory_space<vmem>>, vector<1x49x256xbf16>
    %17 = vector.shape_cast %16 : vector<1x49x256xbf16> to vector<49x256xbf16>
    %cst_18 = arith.constant dense<0.000000e+00> : vector<1x256xf32>
    %18 = tpu.matmul %0, %17, %cst_18 {dimension_numbers = #tpu.dot_dimension_numbers<[1], [0], [0], [1], [0, 0, 1, 1], [], []>} : vector<1x49xbf16>, vector<49x256xbf16>, vector<1x256xf32> -> vector<1x256xf32>
    %cst_19 = arith.constant dense<0.000000e+00> : vector<8x256xf32>
    %19 = tpu.matmul %1, %17, %cst_19 {dimension_numbers = #tpu.dot_dimension_numbers<[1], [0], [0], [1], [0, 0, 1, 1], [], []>} : vector<8x49xbf16>, vector<49x256xbf16>, vector<8x256xf32> -> vector<8x256xf32>
    %20 = math.absf %19 : vector<8x256xf32>
    %cst_20 = arith.constant dense<0.000000e+00> : vector<1x16xf32>
    %21 = tpu.matmul %18, %2, %cst_20 {dimension_numbers = #tpu.dot_dimension_numbers<[1], [0], [0], [1], [0, 0, 1, 1], [], []>} : vector<1x256xf32>, vector<256x16xf32>, vector<1x16xf32> -> vector<1x16xf32>
    %cst_21 = arith.constant dense<0.000000e+00> : vector<8x16xf32>
    %22 = tpu.matmul %20, %2, %cst_21 {dimension_numbers = #tpu.dot_dimension_numbers<[1], [0], [0], [1], [0, 0, 1, 1], [], []>} : vector<8x256xf32>, vector<256x16xf32>, vector<8x16xf32> -> vector<8x16xf32>
    %c0_22 = arith.constant 0 : index
    %c0_23 = arith.constant 0 : index
    %c16 = arith.constant 16 : index
    %23 = vector.load %arg5[%c0_22, %c0_23, %c16] : memref<1x9x64xf32, #tpu.memory_space<vmem>>, vector<1x1x16xf32>
    %24 = vector.shape_cast %23 : vector<1x1x16xf32> to vector<1x16xf32>
    %25 = vector.shape_cast %21 : vector<1x16xf32> to vector<1x1x16xf32>
    tpu.vector_store %arg5[%c0_22, %c0_23, %c16], %25 {strides = array<i32>} : memref<1x9x64xf32, #tpu.memory_space<vmem>>, vector<1x1x16xf32>,
    %c0_24 = arith.constant 0 : index
    %c1_25 = arith.constant 1 : index
    %c16_26 = arith.constant 16 : index
    %26 = vector.load %arg5[%c0_24, %c1_25, %c16_26] : memref<1x9x64xf32, #tpu.memory_space<vmem>>, vector<1x8x16xf32>
    %27 = vector.shape_cast %26 : vector<1x8x16xf32> to vector<8x16xf32>
    %28 = vector.shape_cast %22 : vector<8x16xf32> to vector<1x8x16xf32>
    tpu.vector_store %arg5[%c0_24, %c1_25, %c16_26], %28 {strides = array<i32>} : memref<1x9x64xf32, #tpu.memory_space<vmem>>, vector<1x8x16xf32>,
    %c0_27 = arith.constant 0 : index
    %c0_28 = arith.constant 0 : index
    %c512 = arith.constant 512 : index
    %29 = vector.load %arg1[%c0_27, %c0_28, %c512] : memref<1x49x1024xbf16, #tpu.memory_space<vmem>>, vector<1x49x256xbf16>
    %30 = vector.shape_cast %29 : vector<1x49x256xbf16> to vector<49x256xbf16>
    %cst_29 = arith.constant dense<0.000000e+00> : vector<1x256xf32>
    %31 = tpu.matmul %0, %30, %cst_29 {dimension_numbers = #tpu.dot_dimension_numbers<[1], [0], [0], [1], [0, 0, 1, 1], [], []>} : vector<1x49xbf16>, vector<49x256xbf16>, vector<1x256xf32> -> vector<1x256xf32>
    %cst_30 = arith.constant dense<0.000000e+00> : vector<8x256xf32>
    %32 = tpu.matmul %1, %30, %cst_30 {dimension_numbers = #tpu.dot_dimension_numbers<[1], [0], [0], [1], [0, 0, 1, 1], [], []>} : vector<8x49xbf16>, vector<49x256xbf16>, vector<8x256xf32> -> vector<8x256xf32>
    %33 = math.absf %32 : vector<8x256xf32>
    %cst_31 = arith.constant dense<0.000000e+00> : vector<1x16xf32>
    %34 = tpu.matmul %31, %2, %cst_31 {dimension_numbers = #tpu.dot_dimension_numbers<[1], [0], [0], [1], [0, 0, 1, 1], [], []>} : vector<1x256xf32>, vector<256x16xf32>, vector<1x16xf32> -> vector<1x16xf32>
    %cst_32 = arith.constant dense<0.000000e+00> : vector<8x16xf32>
    %35 = tpu.matmul %33, %2, %cst_32 {dimension_numbers = #tpu.dot_dimension_numbers<[1], [0], [0], [1], [0, 0, 1, 1], [], []>} : vector<8x256xf32>, vector<256x16xf32>, vector<8x16xf32> -> vector<8x16xf32>
    %c0_33 = arith.constant 0 : index
    %c0_34 = arith.constant 0 : index
    %c32 = arith.constant 32 : index
    %36 = vector.load %arg5[%c0_33, %c0_34, %c32] : memref<1x9x64xf32, #tpu.memory_space<vmem>>, vector<1x1x16xf32>
    %37 = vector.shape_cast %36 : vector<1x1x16xf32> to vector<1x16xf32>
    %38 = vector.shape_cast %34 : vector<1x16xf32> to vector<1x1x16xf32>
    tpu.vector_store %arg5[%c0_33, %c0_34, %c32], %38 {strides = array<i32>} : memref<1x9x64xf32, #tpu.memory_space<vmem>>, vector<1x1x16xf32>,
    %c0_35 = arith.constant 0 : index
    %c1_36 = arith.constant 1 : index
    %c32_37 = arith.constant 32 : index
    %39 = vector.load %arg5[%c0_35, %c1_36, %c32_37] : memref<1x9x64xf32, #tpu.memory_space<vmem>>, vector<1x8x16xf32>
    %40 = vector.shape_cast %39 : vector<1x8x16xf32> to vector<8x16xf32>
    %41 = vector.shape_cast %35 : vector<8x16xf32> to vector<1x8x16xf32>
    tpu.vector_store %arg5[%c0_35, %c1_36, %c32_37], %41 {strides = array<i32>} : memref<1x9x64xf32, #tpu.memory_space<vmem>>, vector<1x8x16xf32>,
    %c0_38 = arith.constant 0 : index
    %c0_39 = arith.constant 0 : index
    %c768 = arith.constant 768 : index
    %42 = vector.load %arg1[%c0_38, %c0_39, %c768] : memref<1x49x1024xbf16, #tpu.memory_space<vmem>>, vector<1x49x256xbf16>
    %43 = vector.shape_cast %42 : vector<1x49x256xbf16> to vector<49x256xbf16>
    %cst_40 = arith.constant dense<0.000000e+00> : vector<1x256xf32>
    %44 = tpu.matmul %0, %43, %cst_40 {dimension_numbers = #tpu.dot_dimension_numbers<[1], [0], [0], [1], [0, 0, 1, 1], [], []>} : vector<1x49xbf16>, vector<49x256xbf16>, vector<1x256xf32> -> vector<1x256xf32>
    %cst_41 = arith.constant dense<0.000000e+00> : vector<8x256xf32>
    %45 = tpu.matmul %1, %43, %cst_41 {dimension_numbers = #tpu.dot_dimension_numbers<[1], [0], [0], [1], [0, 0, 1, 1], [], []>} : vector<8x49xbf16>, vector<49x256xbf16>, vector<8x256xf32> -> vector<8x256xf32>
    %46 = math.absf %45 : vector<8x256xf32>
    %cst_42 = arith.constant dense<0.000000e+00> : vector<1x16xf32>
    %47 = tpu.matmul %44, %2, %cst_42 {dimension_numbers = #tpu.dot_dimension_numbers<[1], [0], [0], [1], [0, 0, 1, 1], [], []>} : vector<1x256xf32>, vector<256x16xf32>, vector<1x16xf32> -> vector<1x16xf32>
    %cst_43 = arith.constant dense<0.000000e+00> : vector<8x16xf32>
    %48 = tpu.matmul %46, %2, %cst_43 {dimension_numbers = #tpu.dot_dimension_numbers<[1], [0], [0], [1], [0, 0, 1, 1], [], []>} : vector<8x256xf32>, vector<256x16xf32>, vector<8x16xf32> -> vector<8x16xf32>
    %c0_44 = arith.constant 0 : index
    %c0_45 = arith.constant 0 : index
    %c48 = arith.constant 48 : index
    %49 = vector.load %arg5[%c0_44, %c0_45, %c48] : memref<1x9x64xf32, #tpu.memory_space<vmem>>, vector<1x1x16xf32>
    %50 = vector.shape_cast %49 : vector<1x1x16xf32> to vector<1x16xf32>
    %51 = vector.shape_cast %47 : vector<1x16xf32> to vector<1x1x16xf32>
    tpu.vector_store %arg5[%c0_44, %c0_45, %c48], %51 {strides = array<i32>} : memref<1x9x64xf32, #tpu.memory_space<vmem>>, vector<1x1x16xf32>,
    %c0_46 = arith.constant 0 : index
    %c1_47 = arith.constant 1 : index
    %c48_48 = arith.constant 48 : index
    %52 = vector.load %arg5[%c0_46, %c1_47, %c48_48] : memref<1x9x64xf32, #tpu.memory_space<vmem>>, vector<1x8x16xf32>
    %53 = vector.shape_cast %52 : vector<1x8x16xf32> to vector<8x16xf32>
    %54 = vector.shape_cast %48 : vector<8x16xf32> to vector<1x8x16xf32>
    tpu.vector_store %arg5[%c0_46, %c1_47, %c48_48], %54 {strides = array<i32>} : memref<1x9x64xf32, #tpu.memory_space<vmem>>, vector<1x8x16xf32>,
    return
  }
  func.func @transform_0(%arg0: i32) -> (i32, i32, i32) {
    %c0_i32 = arith.constant 0 : i32
    %c0_i32_0 = arith.constant 0 : i32
    %c0_i32_1 = arith.constant 0 : i32
    return %arg0, %c0_i32, %c0_i32_0 : i32, i32, i32
  }
  func.func @transform_1(%arg0: i32) -> (i32, i32) {
    %c0_i32 = arith.constant 0 : i32
    %c0_i32_0 = arith.constant 0 : i32
    %c0_i32_1 = arith.constant 0 : i32
    return %c0_i32, %c0_i32_0 : i32, i32
  }
  func.func @transform_2(%arg0: i32) -> (i32, i32) {
    %c0_i32 = arith.constant 0 : i32
    %c0_i32_0 = arith.constant 0 : i32
    %c0_i32_1 = arith.constant 0 : i32
    return %c0_i32, %c0_i32_0 : i32, i32
  }
  func.func @transform_3(%arg0: i32) -> (i32, i32) {
    %c0_i32 = arith.constant 0 : i32
    %c0_i32_0 = arith.constant 0 : i32
    %c0_i32_1 = arith.constant 0 : i32
    return %c0_i32, %c0_i32_0 : i32, i32
  }
  func.func @transform_4(%arg0: i32) -> (i32, i32, i32) {
    %c0_i32 = arith.constant 0 : i32
    %c0_i32_0 = arith.constant 0 : i32
    %c0_i32_1 = arith.constant 0 : i32
    return %arg0, %c0_i32, %c0_i32_0 : i32, i32, i32
  }
}

</mosaic_0001>

<llo_original>
// kernel: tpu_custom_call.1
$region0: #{tpu_custom_call.1}
  #allocation0 [shape = 'u32[]', space=smem, size = 0x4, offset = 0x4, fixed_abs, tag = 'smem constant byte address 0x4 - core index']
  #allocation1 [shape = 'u32[144,128]{1,0:T(1,128)}', space=vmem, size = 0x12000, scoped, tag = 'internal scratch']
  %s0 = inlined_call_operand.vmem [shape: bf16[2,49,1024], index: 0, kind: input, shape index: {}]
  %s1 = inlined_call_operand.vmem [shape: bf16[1,49], index: 1, kind: input, shape index: {}]
  %s2 = inlined_call_operand.vmem [shape: bf16[8,49], index: 2, kind: input, shape index: {}]
  %s3 = inlined_call_operand.vmem [shape: f32[256,16], index: 3, kind: input, shape index: {}]
  %s4 = inlined_call_operand.vmem [shape: f32[2,9,64], index: 4, kind: output, shape index: {}]
  %s5 = sld [smem:[#allocation0]]
  $region49: #{tpu_custom_call.1} parent=0
    _
  %s7 = ssub.s32 1, %s5
  %s8 = scalar_select 0, %s7, %s5
  loop: start=0, step=1, limit=4
  $region2: #{tpu_custom_call.1} parent=0 // loop_pre_header
    _
  $region3: #{tpu_custom_call.1} parent=0 // loop_header
    %s10 = sphi 0, %s14
    %p11 = scmp.ge.s32.totalorder %s10, 4
    %s20 = sphi 0, %s22
    %s23 = sphi 0, %s20
    %s24 = sphi 0, %s23
    %s40 = sphi 0, %s24
    %s44 = sphi 0, %s44
    %s46 = sphi 0, %s44
    %s47 = sphi 0, %s46
    %s61 = sphi 0, %s47
    %s65 = sphi 0, %s65
    %s67 = sphi 0, %s65
    %s68 = sphi 0, %s67
    %s82 = sphi 0, %s68
    %s86 = sphi 0, %s86
    %s88 = sphi 0, %s86
    %s89 = sphi 0, %s88
    %s103 = sphi 0, %s89
    %s109 = sphi 0, %s111
    %s112 = sphi 0, %s109
    %s113 = sphi 0, %s112
    %s129 = sphi 0, %s113
  $region4: #{tpu_custom_call.1} parent=0 // loop_header_branch
    %13 = sbr.rel (%p11) target = $region8
  $region5: #{tpu_custom_call.1} parent=0 // loop_body
    %s15 = ssub.s32 %s10, 1
    %s16 = ssub.s32 %s10, 2
    %s17 = sadd.s32 %s10, 1
    %s18 = ssub.s32 %s10, %s17
    %p19 = scmp.eq.s32.totalorder %s18, 0
    %s21 = sadd.s32 %s20, 1
    %s22 = scalar_select %p19, %s20, %s21
    %p25 = pneg %p19
    %p26 = scmp.eq.s32.totalorder %s10, 1
    %p27 = por %p25, %p26
    %p28 = scmp.ne.s32.totalorder %s20, %s23
    %p29 = scmp.eq.s32.totalorder %s10, 0
    %p30 = por %p28, %p29
    %p31 = scmp.ne.s32.totalorder %s20, %s23
    %p32 = scmp.eq.s32.totalorder %s15, 1
    %p33 = por %p31, %p32
    %p34 = scmp.ne.s32.totalorder %s23, %s24
    %p35 = scmp.eq.s32.totalorder %s15, 0
    %p36 = por %p34, %p35
    %p37 = scmp.ne.s32.totalorder %s23, %s24
    %p38 = scmp.eq.s32.totalorder %s16, 1
    %p39 = por %p37, %p38
    %p41 = scmp.ne.s32.totalorder %s24, %s40
    %p42 = scmp.eq.s32.totalorder %s16, 0
    %p43 = por %p41, %p42
    %s45 = sadd.s32 %s44, 1
    %p48 = scmp.eq.s32.totalorder %s10, 1
    %p49 = scmp.ne.s32.totalorder %s44, %s46
    %p50 = scmp.eq.s32.totalorder %s10, 0
    %p51 = por %p49, %p50
    %p52 = scmp.ne.s32.totalorder %s44, %s46
    %p53 = scmp.eq.s32.totalorder %s15, 1
    %p54 = por %p52, %p53
    %p55 = scmp.ne.s32.totalorder %s46, %s47
    %p56 = scmp.eq.s32.totalorder %s15, 0
    %p57 = por %p55, %p56
    %p58 = scmp.ne.s32.totalorder %s46, %s47
    %p59 = scmp.eq.s32.totalorder %s16, 1
    %p60 = por %p58, %p59
    %p62 = scmp.ne.s32.totalorder %s47, %s61
    %p63 = scmp.eq.s32.totalorder %s16, 0
    %p64 = por %p62, %p63
    %s66 = sadd.s32 %s65, 1
    %p69 = scmp.eq.s32.totalorder %s10, 1
    %p70 = scmp.ne.s32.totalorder %s65, %s67
    %p71 = scmp.eq.s32.totalorder %s10, 0
    %p72 = por %p70, %p71
    %p73 = scmp.ne.s32.totalorder %s65, %s67
    %p74 = scmp.eq.s32.totalorder %s15, 1
    %p75 = por %p73, %p74
    %p76 = scmp.ne.s32.totalorder %s67, %s68
    %p77 = scmp.eq.s32.totalorder %s15, 0
    %p78 = por %p76, %p77
    %p79 = scmp.ne.s32.totalorder %s67, %s68
    %p80 = scmp.eq.s32.totalorder %s16, 1
    %p81 = por %p79, %p80
    %p83 = scmp.ne.s32.totalorder %s68, %s82
    %p84 = scmp.eq.s32.totalorder %s16, 0
    %p85 = por %p83, %p84
    %s87 = sadd.s32 %s86, 1
    %p90 = scmp.eq.s32.totalorder %s10, 1
    %p91 = scmp.ne.s32.totalorder %s86, %s88
    %p92 = scmp.eq.s32.totalorder %s10, 0
    %p93 = por %p91, %p92
    %p94 = scmp.ne.s32.totalorder %s86, %s88
    %p95 = scmp.eq.s32.totalorder %s15, 1
    %p96 = por %p94, %p95
    %p97 = scmp.ne.s32.totalorder %s88, %s89
    %p98 = scmp.eq.s32.totalorder %s15, 0
    %p99 = por %p97, %p98
    %p100 = scmp.ne.s32.totalorder %s88, %s89
    %p101 = scmp.eq.s32.totalorder %s16, 1
    %p102 = por %p100, %p101
    %p104 = scmp.ne.s32.totalorder %s89, %s103
    %p105 = scmp.eq.s32.totalorder %s16, 0
    %p106 = por %p104, %p105
    %s107 = ssub.s32 %s10, %s17
    %p108 = scmp.eq.s32.totalorder %s107, 0
    %s110 = sadd.s32 %s109, 1
    %s111 = scalar_select %p108, %s109, %s110
    %p114 = pneg %p108
    %p115 = scmp.eq.s32.totalorder %s10, 1
    %p116 = por %p114, %p115
    %p117 = scmp.ne.s32.totalorder %s109, %s112
    %p118 = scmp.eq.s32.totalorder %s10, 0
    %p119 = por %p117, %p118
    %p120 = scmp.ne.s32.totalorder %s109, %s112
    %p121 = scmp.eq.s32.totalorder %s15, 1
    %p122 = por %p120, %p121
    %p123 = scmp.ne.s32.totalorder %s112, %s113
    %p124 = scmp.eq.s32.totalorder %s15, 0
    %p125 = por %p123, %p124
    %p126 = scmp.ne.s32.totalorder %s112, %s113
    %p127 = scmp.eq.s32.totalorder %s16, 1
    %p128 = por %p126, %p127
    %p130 = scmp.ne.s32.totalorder %s113, %s129
    %p131 = scmp.eq.s32.totalorder %s16, 0
    %p132 = por %p130, %p131
    %p133 = scmp.le.s32.totalorder 1, %s10
    %p134 = scmp.lt.s32.totalorder %s10, 3
    %p135 = pnand %p133, %p134
    %p136 = pneg %p135
    // Predicated region
    $region9: #{tpu_custom_call.1} parent=5 // pred_check
      _
    $region10: #{tpu_custom_call.1} parent=5 // pred_check_branch
      %138 = sbr.rel (%p135) target = $region12
    $region11: #{tpu_custom_call.1} parent=5 // pred_region
      %s139 = ssub.s32 %s10, 1
      // Predicated region
      $region13: #{tpu_custom_call.1} parent=11 // pred_check
        %p140 = pneg %p57
      $region14: #{tpu_custom_call.1} parent=11 // pred_check_branch
        %142 = sbr.rel (%p140) target = $region16
      $region15: #{tpu_custom_call.1} parent=11 // pred_region
        _
      $region16: #{tpu_custom_call.1} parent=11 // pred_fallthru
        _
      // Predicated region
      $region17: #{tpu_custom_call.1} parent=11 // pred_check
        %p143 = pneg %p78
      $region18: #{tpu_custom_call.1} parent=11 // pred_check_branch
        %145 = sbr.rel (%p143) target = $region20
      $region19: #{tpu_custom_call.1} parent=11 // pred_region
        _
      $region20: #{tpu_custom_call.1} parent=11 // pred_fallthru
        _
      // Predicated region
      $region21: #{tpu_custom_call.1} parent=11 // pred_check
        %p146 = pneg %p99
      $region22: #{tpu_custom_call.1} parent=11 // pred_check_branch
        %148 = sbr.rel (%p146) target = $region24
      $region23: #{tpu_custom_call.1} parent=11 // pred_region
        _
      $region24: #{tpu_custom_call.1} parent=11 // pred_fallthru
        _
    $region12: #{tpu_custom_call.1} parent=5 // pred_fallthru
      _
    %p149 = scmp.lt.s32.totalorder %s10, 2
    // Predicated region
    $region25: #{tpu_custom_call.1} parent=5 // pred_check
      %p150 = pneg %p149
    $region26: #{tpu_custom_call.1} parent=5 // pred_check_branch
      %152 = sbr.rel (%p150) target = $region28
    $region27: #{tpu_custom_call.1} parent=5 // pred_region
      // Predicated region
      $region29: #{tpu_custom_call.1} parent=27 // pred_check
        %p153 = pneg %p30
      $region30: #{tpu_custom_call.1} parent=27 // pred_check_branch
        %155 = sbr.rel (%p153) target = $region32
      $region31: #{tpu_custom_call.1} parent=27 // pred_region
        %p156 = scmp.lt.s32.totalorder %s10, 1
        %s157 = scalar_select %p156, %s10, 1
        %s158 = smul.addr %s157, 56
        %s159 = smul.addr %s158, 4
        %s160 = scalar_lea.vmem %s0, %s159
      $region32: #{tpu_custom_call.1} parent=27 // pred_fallthru
        _
    $region28: #{tpu_custom_call.1} parent=5 // pred_fallthru
      _
    %p161 = scmp.le.s32.totalorder 1, %s10
    %p162 = scmp.lt.s32.totalorder %s10, 3
    %p163 = pnand %p161, %p162
    %p164 = pneg %p163
    // Predicated region
    $region33: #{tpu_custom_call.1} parent=5 // pred_check
      _
    $region34: #{tpu_custom_call.1} parent=5 // pred_check_branch
      %166 = sbr.rel (%p163) target = $region36
    $region35: #{tpu_custom_call.1} parent=5 // pred_region
      %s167 = ssub.s32 %s10, 1
      %p168 = scmp.lt.s32.totalorder %s15, 1
      %s169 = scalar_select %p168, %s15, 1
      %s170 = smul.addr %s169, 56
      %s171 = smul.addr %s170, 4
      %s172 = scalar_lea.vmem %s0, %s171
      %p173 = pneg %p36
      %p174 = pneg %p33
      %p175 = pneg %p57
      %p176 = pneg %p54
      %p177 = pneg %p78
      %p178 = pneg %p75
      %p179 = pneg %p99
      %p180 = pneg %p96
      %p181 = pneg %p125
      %p182 = pneg %p122
      %p183 = scmp.lt.s32.totalorder %s15, 1
      %s184 = scalar_select %p183, %s15, 1
      %s185 = smul.addr %s184, 2
      %s186 = smul.addr %s185, 8
      %s187 = scalar_lea.vmem %s4, %s186
      %p188 = scmp.lt.s32.totalorder %s15, 1
      %s189 = scalar_select %p188, %s15, 1
      %s190 = smul.addr %s189, 56
      %s191 = smul.addr %s190, 4
      %s192 = scalar_lea.vmem %s0, %s191
      %p193 = scmp.lt.s32.totalorder %s15, 1
      %s194 = scalar_select %p193, %s15, 1
      %s195 = smul.addr %s194, 2
      %s196 = smul.addr %s195, 8
      %s197 = scalar_lea.vmem %s4, %s196
      %v199 = vld [vmem:[%s1] sm:$0x1]
      %v200 = vld [vmem:[%s2] sm:$0xf]
      %v201 = vld [vmem:[%s3] sm:$0xff]
      %v202 = vld [vmem:[%s3 + $0x8] sm:$0xff]
      %v203 = vld [vmem:[%s3 + $0x10] sm:$0xff]
      %v204 = vld [vmem:[%s3 + $0x18] sm:$0xff]
      %v205 = vld [vmem:[%s3 + $0x20] sm:$0xff]
      %v206 = vld [vmem:[%s3 + $0x28] sm:$0xff]
      %v207 = vld [vmem:[%s3 + $0x30] sm:$0xff]
      %v208 = vld [vmem:[%s3 + $0x38] sm:$0xff]
      %v209 = vld [vmem:[%s3 + $0x40] sm:$0xff]
      %v210 = vld [vmem:[%s3 + $0x48] sm:$0xff]
      %v211 = vld [vmem:[%s3 + $0x50] sm:$0xff]
      %v212 = vld [vmem:[%s3 + $0x58] sm:$0xff]
      %v213 = vld [vmem:[%s3 + $0x60] sm:$0xff]
      %v214 = vld [vmem:[%s3 + $0x68] sm:$0xff]
      %v215 = vld [vmem:[%s3 + $0x70] sm:$0xff]
      %v216 = vld [vmem:[%s3 + $0x78] sm:$0xff]
      %v217 = vld [vmem:[%s3 + $0x80] sm:$0xff]
      %v218 = vld [vmem:[%s3 + $0x88] sm:$0xff]
      %v219 = vld [vmem:[%s3 + $0x90] sm:$0xff]
      %v220 = vld [vmem:[%s3 + $0x98] sm:$0xff]
      %v221 = vld [vmem:[%s3 + $0xa0] sm:$0xff]
      %v222 = vld [vmem:[%s3 + $0xa8] sm:$0xff]
      %v223 = vld [vmem:[%s3 + $0xb0] sm:$0xff]
      %v224 = vld [vmem:[%s3 + $0xb8] sm:$0xff]
      %v225 = vld [vmem:[%s3 + $0xc0] sm:$0xff]
      %v226 = vld [vmem:[%s3 + $0xc8] sm:$0xff]
      %v227 = vld [vmem:[%s3 + $0xd0] sm:$0xff]
      %v228 = vld [vmem:[%s3 + $0xd8] sm:$0xff]
      %v229 = vld [vmem:[%s3 + $0xe0] sm:$0xff]
      %v230 = vld [vmem:[%s3 + $0xe8] sm:$0xff]
      %v231 = vld [vmem:[%s3 + $0xf0] sm:$0xff]
      %v232 = vld [vmem:[%s3 + $0xf8] sm:$0xff]
      %v233 = vld [vmem:[%s192] sm:$0xff]
      %v234 = vld [vmem:[%s192 + $0x20] sm:$0xff]
      %v235 = vld [vmem:[%s192 + $0x40] sm:$0xff]
      %v236 = vld [vmem:[%s192 + $0x60] sm:$0xff]
      %v237 = vld [vmem:[%s192 + $0x80] sm:$0xff]
      %v238 = vld [vmem:[%s192 + $0xa0] sm:$0xff]
      %v239 = vld [vmem:[%s192 + $0xc0] sm:$0x11]
      %v247 = vunpack.c.l.b16 %v233
      %v248 = vunpack.c.h.b16 %v233
      %v249 = vunpack.c.l.b16 %v234
      %v250 = vunpack.c.h.b16 %v234
      %v251 = vunpack.c.l.b16 %v235
      %v252 = vunpack.c.h.b16 %v235
      %v253 = vunpack.c.l.b16 %v236
      %v254 = vunpack.c.h.b16 %v236
      %v255 = vunpack.c.l.b16 %v237
      %v256 = vunpack.c.h.b16 %v237
      %v257 = vunpack.c.l.b16 %v238
      %v258 = vunpack.c.h.b16 %v238
      %v259 = vunpack.c.l.b16 %v239
      %v260 = vunpack.c.h.b16 %v239
      %v261 = vpack.c.b16 %v249, %v247
      %v262 = vpack.c.b16 %v250, %v248
      %v263 = vpack.c.b16 %v253, %v251
      %v264 = vpack.c.b16 %v254, %v252
      %v265 = vpack.c.b16 %v257, %v255
      %v266 = vpack.c.b16 %v258, %v256
      %v267 = vpack.c.b16 %v259, %v259
      %v268 = vpack.c.b16 %v260, %v260
      %vm275 = vcmask 400384
      %v277 = vsel %vm275, %v199, 0
      %vm279 = vcmask 1040384
      %v280 = vsel 0, 4294967295, 65535
      %v281 = vsel %vm279, %v280, 0
      %v283 = vand.u32 %v267, %v281
      %v286 = vand.u32 %v268, %v281
      %288 = vmatprep.subr.bf16.mxu0 %v262
      %289 = vmatpush1.bf16.msra.mxu0 %v261
      %290 = vmatprep.subr.bf16.mxu0 %v264
      %291 = vmatpush1.bf16.msra.mxu0 %v263
      %292 = vmatprep.subr.bf16.mxu0 %v266
      %293 = vmatpush1.bf16.msra.mxu0 %v265
      %294 = vmatprep.subr.bf16.mxu0 %v286
      %295 = vmatpush1.bf16.msra.mxu0 %v283
      %296 = vmatprep.subr.bf16.mxu0 0
      %297 = vmatpush1.bf16.msra.mxu0 0
      %298 = vmatprep.subr.bf16.mxu0 0
      %299 = vmatpush1.bf16.msra.mxu0 0
      %300 = vmatprep.subr.bf16.mxu0 0
      %301 = vmatpush1.bf16.msra.mxu0 0
      %302 = vmatprep.subr.bf16.mxu0 0
      %303 = vmatpush1.bf16.msra.mxu0 0
      %304 = vmatprep.subr.bf16.mxu0 0
      %305 = vmatpush1.bf16.msra.mxu0 0
      %306 = vmatprep.subr.bf16.mxu0 0
      %307 = vmatpush1.bf16.msra.mxu0 0
      %308 = vmatprep.subr.bf16.mxu0 0
      %309 = vmatpush1.bf16.msra.mxu0 0
      %310 = vmatprep.subr.bf16.mxu0 0
      %311 = vmatpush1.bf16.msra.mxu0 0
      %312 = vmatprep.subr.bf16.mxu0 0
      %313 = vmatpush1.bf16.msra.mxu0 0
      %314 = vmatprep.subr.bf16.mxu0 0
      %315 = vmatpush1.bf16.msra.mxu0 0
      %316 = vmatprep.subr.bf16.mxu0 0
      %317 = vmatpush1.bf16.msra.mxu0 0
      %318 = vmatprep.subr.bf16.mxu0 0
      %319 = vmatpush1.bf16.msra.mxu0 0
      %320 = vmatprep.mubr.bf16.mxu0 0
      %321 = vmatmul.mubr.bf16.gmra.mrb[0].mxu0 %v277
      %v322 = vpop.f32.mrb[0].mxu0
      %v323 = vadd.f32 0.0, %v322
      %v324 = vpop.f32.mrb[0].mxu0
      %v325 = vadd.f32 0.0, %v324
      %v326 = vpop.f32.mrb[0].mxu0
      %v327 = vpop.f32.mrb[0].mxu0
      %328 = vdwg.mxu0
      %v330 = vsel %vm275, %v200, 0
      %332 = vmatprep.subr.bf16.mxu0 %v262
      %333 = vmatpush1.bf16.msra.mxu0 %v261
      %334 = vmatprep.subr.bf16.mxu0 %v264
      %335 = vmatpush1.bf16.msra.mxu0 %v263
      %336 = vmatprep.subr.bf16.mxu0 %v266
      %337 = vmatpush1.bf16.msra.mxu0 %v265
      %338 = vmatprep.subr.bf16.mxu0 %v286
      %339 = vmatpush1.bf16.msra.mxu0 %v283
      %340 = vmatprep.subr.bf16.mxu0 0
      %341 = vmatpush1.bf16.msra.mxu0 0
      %342 = vmatprep.subr.bf16.mxu0 0
      %343 = vmatpush1.bf16.msra.mxu0 0
      %344 = vmatprep.subr.bf16.mxu0 0
      %345 = vmatpush1.bf16.msra.mxu0 0
      %346 = vmatprep.subr.bf16.mxu0 0
      %347 = vmatpush1.bf16.msra.mxu0 0
      %348 = vmatprep.subr.bf16.mxu0 0
      %349 = vmatpush1.bf16.msra.mxu0 0
      %350 = vmatprep.subr.bf16.mxu0 0
      %351 = vmatpush1.bf16.msra.mxu0 0
      %352 = vmatprep.subr.bf16.mxu0 0
      %353 = vmatpush1.bf16.msra.mxu0 0
      %354 = vmatprep.subr.bf16.mxu0 0
      %355 = vmatpush1.bf16.msra.mxu0 0
      %356 = vmatprep.subr.bf16.mxu0 0
      %357 = vmatpush1.bf16.msra.mxu0 0
      %358 = vmatprep.subr.bf16.mxu0 0
      %359 = vmatpush1.bf16.msra.mxu0 0
      %360 = vmatprep.subr.bf16.mxu0 0
      %361 = vmatpush1.bf16.msra.mxu0 0
      %362 = vmatprep.subr.bf16.mxu0 0
      %363 = vmatpush1.bf16.msra.mxu0 0
      %364 = vmatprep.mubr.bf16.mxu0 0
      %365 = vmatmul.mubr.bf16.gmra.mrb[0].mxu0 %v330
      %v366 = vpop.f32.mrb[0].mxu0
      %v367 = vadd.f32 0.0, %v366
      %v368 = vpop.f32.mrb[0].mxu0
      %v369 = vadd.f32 0.0, %v368
      %v370 = vpop.f32.mrb[0].mxu0
      %v371 = vpop.f32.mrb[0].mxu0
      %372 = vdwg.mxu0
      %v373 = vand.u32 2147483647, %v367
      %v374 = vand.u32 2147483647, %v369
      %375 = vmatprep.subr.mxu0 0.0
      %376 = vmatpush1.msra.mxu0 %v201
      %377 = vmatprep.subr.mxu0 0.0
      %378 = vmatpush1.msra.mxu0 %v202
      %379 = vmatprep.subr.mxu0 0.0
      %380 = vmatpush1.msra.mxu0 %v203
      %381 = vmatprep.subr.mxu0 0.0
      %382 = vmatpush1.msra.mxu0 %v204
      %383 = vmatprep.subr.mxu0 0.0
      %384 = vmatpush1.msra.mxu0 %v205
      %385 = vmatprep.subr.mxu0 0.0
      %386 = vmatpush1.msra.mxu0 %v206
      %387 = vmatprep.subr.mxu0 0.0
      %388 = vmatpush1.msra.mxu0 %v207
      %389 = vmatprep.subr.mxu0 0.0
      %390 = vmatpush1.msra.mxu0 %v208
      %391 = vmatprep.subr.mxu0 0.0
      %392 = vmatpush1.msra.mxu0 %v209
      %393 = vmatprep.subr.mxu0 0.0
      %394 = vmatpush1.msra.mxu0 %v210
      %395 = vmatprep.subr.mxu0 0.0
      %396 = vmatpush1.msra.mxu0 %v211
      %397 = vmatprep.subr.mxu0 0.0
      %398 = vmatpush1.msra.mxu0 %v212
      %399 = vmatprep.subr.mxu0 0.0
      %400 = vmatpush1.msra.mxu0 %v213
      %401 = vmatprep.subr.mxu0 0.0
      %402 = vmatpush1.msra.mxu0 %v214
      %403 = vmatprep.subr.mxu0 0.0
      %404 = vmatpush1.msra.mxu0 %v215
      %405 = vmatprep.subr.mxu0 0.0
      %406 = vmatpush1.msra.mxu0 %v216
      %407 = vmatprep.subr.mxu0 0.0
      %408 = vmatpush1.msra.mxu0 %v217
      %409 = vmatprep.subr.mxu0 0.0
      %410 = vmatpush1.msra.mxu0 %v218
      %411 = vmatprep.subr.mxu0 0.0
      %412 = vmatpush1.msra.mxu0 %v219
      %413 = vmatprep.subr.mxu0 0.0
      %414 = vmatpush1.msra.mxu0 %v220
      %415 = vmatprep.subr.mxu0 0.0
      %416 = vmatpush1.msra.mxu0 %v221
      %417 = vmatprep.subr.mxu0 0.0
      %418 = vmatpush1.msra.mxu0 %v222
      %419 = vmatprep.subr.mxu0 0.0
      %420 = vmatpush1.msra.mxu0 %v223
      %421 = vmatprep.subr.mxu0 0.0
      %422 = vmatpush1.msra.mxu0 %v224
      %423 = vmatprep.subr.mxu0 0.0
      %424 = vmatpush1.msra.mxu0 %v225
      %425 = vmatprep.subr.mxu0 0.0
      %426 = vmatpush1.msra.mxu0 %v226
      %427 = vmatprep.subr.mxu0 0.0
      %428 = vmatpush1.msra.mxu0 %v227
      %429 = vmatprep.subr.mxu0 0.0
      %430 = vmatpush1.msra.mxu0 %v228
      %431 = vmatprep.subr.mxu0 0.0
      %432 = vmatpush1.msra.mxu0 %v229
      %433 = vmatprep.subr.mxu0 0.0
      %434 = vmatpush1.msra.mxu0 %v230
      %435 = vmatprep.subr.mxu0 0.0
      %436 = vmatpush1.msra.mxu0 %v231
      %437 = vmatprep.subr.mxu0 0.0
      %438 = vmatpush1.msra.mxu0 %v232
      %439 = vmatprep.mubr.f32.mxu0 %v325
      %440 = vmatmul.mubr.f32.gmra.mrb[0].mxu0 %v323
      %v441 = vpop.f32.mrb[0].mxu0
      %v442 = vadd.f32 0.0, %v441
      %v443 = vpop.f32.mrb[0].mxu0
      %444 = vdwg.mxu0
      %445 = vmatprep.subr.mxu0 0.0
      %446 = vmatpush1.msra.mxu0 %v201
      %447 = vmatprep.subr.mxu0 0.0
      %448 = vmatpush1.msra.mxu0 %v202
      %449 = vmatprep.subr.mxu0 0.0
      %450 = vmatpush1.msra.mxu0 %v203
      %451 = vmatprep.subr.mxu0 0.0
      %452 = vmatpush1.msra.mxu0 %v204
      %453 = vmatprep.subr.mxu0 0.0
      %454 = vmatpush1.msra.mxu0 %v205
      %455 = vmatprep.subr.mxu0 0.0
      %456 = vmatpush1.msra.mxu0 %v206
      %457 = vmatprep.subr.mxu0 0.0
      %458 = vmatpush1.msra.mxu0 %v207
      %459 = vmatprep.subr.mxu0 0.0
      %460 = vmatpush1.msra.mxu0 %v208
      %461 = vmatprep.subr.mxu0 0.0
      %462 = vmatpush1.msra.mxu0 %v209
      %463 = vmatprep.subr.mxu0 0.0
      %464 = vmatpush1.msra.mxu0 %v210
      %465 = vmatprep.subr.mxu0 0.0
      %466 = vmatpush1.msra.mxu0 %v211
      %467 = vmatprep.subr.mxu0 0.0
      %468 = vmatpush1.msra.mxu0 %v212
      %469 = vmatprep.subr.mxu0 0.0
      %470 = vmatpush1.msra.mxu0 %v213
      %471 = vmatprep.subr.mxu0 0.0
      %472 = vmatpush1.msra.mxu0 %v214
      %473 = vmatprep.subr.mxu0 0.0
      %474 = vmatpush1.msra.mxu0 %v215
      %475 = vmatprep.subr.mxu0 0.0
      %476 = vmatpush1.msra.mxu0 %v216
      %477 = vmatprep.subr.mxu0 0.0
      %478 = vmatpush1.msra.mxu0 %v217
      %479 = vmatprep.subr.mxu0 0.0
      %480 = vmatpush1.msra.mxu0 %v218
      %481 = vmatprep.subr.mxu0 0.0
      %482 = vmatpush1.msra.mxu0 %v219
      %483 = vmatprep.subr.mxu0 0.0
      %484 = vmatpush1.msra.mxu0 %v220
      %485 = vmatprep.subr.mxu0 0.0
      %486 = vmatpush1.msra.mxu0 %v221
      %487 = vmatprep.subr.mxu0 0.0
      %488 = vmatpush1.msra.mxu0 %v222
      %489 = vmatprep.subr.mxu0 0.0
      %490 = vmatpush1.msra.mxu0 %v223
      %491 = vmatprep.subr.mxu0 0.0
      %492 = vmatpush1.msra.mxu0 %v224
      %493 = vmatprep.subr.mxu0 0.0
      %494 = vmatpush1.msra.mxu0 %v225
      %495 = vmatprep.subr.mxu0 0.0
      %496 = vmatpush1.msra.mxu0 %v226
      %497 = vmatprep.subr.mxu0 0.0
      %498 = vmatpush1.msra.mxu0 %v227
      %499 = vmatprep.subr.mxu0 0.0
      %500 = vmatpush1.msra.mxu0 %v228
      %501 = vmatprep.subr.mxu0 0.0
      %502 = vmatpush1.msra.mxu0 %v229
      %503 = vmatprep.subr.mxu0 0.0
      %504 = vmatpush1.msra.mxu0 %v230
      %505 = vmatprep.subr.mxu0 0.0
      %506 = vmatpush1.msra.mxu0 %v231
      %507 = vmatprep.subr.mxu0 0.0
      %508 = vmatpush1.msra.mxu0 %v232
      %509 = vmatprep.mubr.f32.mxu0 %v374
      %510 = vmatmul.mubr.f32.gmra.mrb[0].mxu0 %v373
      %v511 = vpop.f32.mrb[0].mxu0
      %v512 = vadd.f32 0.0, %v511
      %v513 = vpop.f32.mrb[0].mxu0
      %514 = vdwg.mxu0
      %vm515 = vcmask 122880
      %516 = vst.msk [vmem:[%s197] sm:$0x1] %vm515, %v442
      %vm517 = vcmask 130048
      %518 = vst.msk [vmem:[%s197 + $0x1] sm:$0xff] %vm517, %v512
      %v519 = vld [vmem:[%s192 + $0x8] sm:$0xff]
      %v520 = vld [vmem:[%s192 + $0x28] sm:$0xff]
      %v521 = vld [vmem:[%s192 + $0x48] sm:$0xff]
      %v522 = vld [vmem:[%s192 + $0x68] sm:$0xff]
      %v523 = vld [vmem:[%s192 + $0x88] sm:$0xff]
      %v524 = vld [vmem:[%s192 + $0xa8] sm:$0xff]
      %v525 = vld [vmem:[%s192 + $0xc8] sm:$0x11]
      %v533 = vunpack.c.l.b16 %v519
      %v534 = vunpack.c.h.b16 %v519
      %v535 = vunpack.c.l.b16 %v520
      %v536 = vunpack.c.h.b16 %v520
      %v537 = vunpack.c.l.b16 %v521
      %v538 = vunpack.c.h.b16 %v521
      %v539 = vunpack.c.l.b16 %v522
      %v540 = vunpack.c.h.b16 %v522
      %v541 = vunpack.c.l.b16 %v523
      %v542 = vunpack.c.h.b16 %v523
      %v543 = vunpack.c.l.b16 %v524
      %v544 = vunpack.c.h.b16 %v524
      %v545 = vunpack.c.l.b16 %v525
      %v546 = vunpack.c.h.b16 %v525
      %v547 = vpack.c.b16 %v535, %v533
      %v548 = vpack.c.b16 %v536, %v534
      %v549 = vpack.c.b16 %v539, %v537
      %v550 = vpack.c.b16 %v540, %v538
      %v551 = vpack.c.b16 %v543, %v541
      %v552 = vpack.c.b16 %v544, %v542
      %v553 = vpack.c.b16 %v545, %v545
      %v554 = vpack.c.b16 %v546, %v546
      %v562 = vand.u32 %v553, %v281
      %v565 = vand.u32 %v554, %v281
      %567 = vmatprep.subr.bf16.mxu0 %v548
      %568 = vmatpush1.bf16.msra.mxu0 %v547
      %569 = vmatprep.subr.bf16.mxu0 %v550
      %570 = vmatpush1.bf16.msra.mxu0 %v549
      %571 = vmatprep.subr.bf16.mxu0 %v552
      %572 = vmatpush1.bf16.msra.mxu0 %v551
      %573 = vmatprep.subr.bf16.mxu0 %v565
      %574 = vmatpush1.bf16.msra.mxu0 %v562
      %575 = vmatprep.subr.bf16.mxu0 0
      %576 = vmatpush1.bf16.msra.mxu0 0
      %577 = vmatprep.subr.bf16.mxu0 0
      %578 = vmatpush1.bf16.msra.mxu0 0
      %579 = vmatprep.subr.bf16.mxu0 0
      %580 = vmatpush1.bf16.msra.mxu0 0
      %581 = vmatprep.subr.bf16.mxu0 0
      %582 = vmatpush1.bf16.msra.mxu0 0
      %583 = vmatprep.subr.bf16.mxu0 0
      %584 = vmatpush1.bf16.msra.mxu0 0
      %585 = vmatprep.subr.bf16.mxu0 0
      %586 = vmatpush1.bf16.msra.mxu0 0
      %587 = vmatprep.subr.bf16.mxu0 0
      %588 = vmatpush1.bf16.msra.mxu0 0
      %589 = vmatprep.subr.bf16.mxu0 0
      %590 = vmatpush1.bf16.msra.mxu0 0
      %591 = vmatprep.subr.bf16.mxu0 0
      %592 = vmatpush1.bf16.msra.mxu0 0
      %593 = vmatprep.subr.bf16.mxu0 0
      %594 = vmatpush1.bf16.msra.mxu0 0
      %595 = vmatprep.subr.bf16.mxu0 0
      %596 = vmatpush1.bf16.msra.mxu0 0
      %597 = vmatprep.subr.bf16.mxu0 0
      %598 = vmatpush1.bf16.msra.mxu0 0
      %599 = vmatprep.mubr.bf16.mxu0 0
      %600 = vmatmul.mubr.bf16.gmra.mrb[0].mxu0 %v277
      %v601 = vpop.f32.mrb[0].mxu0
      %v602 = vadd.f32 0.0, %v601
      %v603 = vpop.f32.mrb[0].mxu0
      %v604 = vadd.f32 0.0, %v603
      %v605 = vpop.f32.mrb[0].mxu0
      %v606 = vpop.f32.mrb[0].mxu0
      %607 = vdwg.mxu0
      %608 = vmatprep.subr.bf16.mxu0 %v548
      %609 = vmatpush1.bf16.msra.mxu0 %v547
      %610 = vmatprep.subr.bf16.mxu0 %v550
      %611 = vmatpush1.bf16.msra.mxu0 %v549
      %612 = vmatprep.subr.bf16.mxu0 %v552
      %613 = vmatpush1.bf16.msra.mxu0 %v551
      %614 = vmatprep.subr.bf16.mxu0 %v565
      %615 = vmatpush1.bf16.msra.mxu0 %v562
      %616 = vmatprep.subr.bf16.mxu0 0
      %617 = vmatpush1.bf16.msra.mxu0 0
      %618 = vmatprep.subr.bf16.mxu0 0
      %619 = vmatpush1.bf16.msra.mxu0 0
      %620 = vmatprep.subr.bf16.mxu0 0
      %621 = vmatpush1.bf16.msra.mxu0 0
      %622 = vmatprep.subr.bf16.mxu0 0
      %623 = vmatpush1.bf16.msra.mxu0 0
      %624 = vmatprep.subr.bf16.mxu0 0
      %625 = vmatpush1.bf16.msra.mxu0 0
      %626 = vmatprep.subr.bf16.mxu0 0
      %627 = vmatpush1.bf16.msra.mxu0 0
      %628 = vmatprep.subr.bf16.mxu0 0
      %629 = vmatpush1.bf16.msra.mxu0 0
      %630 = vmatprep.subr.bf16.mxu0 0
      %631 = vmatpush1.bf16.msra.mxu0 0
      %632 = vmatprep.subr.bf16.mxu0 0
      %633 = vmatpush1.bf16.msra.mxu0 0
      %634 = vmatprep.subr.bf16.mxu0 0
      %635 = vmatpush1.bf16.msra.mxu0 0
      %636 = vmatprep.subr.bf16.mxu0 0
      %637 = vmatpush1.bf16.msra.mxu0 0
      %638 = vmatprep.subr.bf16.mxu0 0
      %639 = vmatpush1.bf16.msra.mxu0 0
      %640 = vmatprep.mubr.bf16.mxu0 0
      %641 = vmatmul.mubr.bf16.gmra.mrb[0].mxu0 %v330
      %v642 = vpop.f32.mrb[0].mxu0
      %v643 = vadd.f32 0.0, %v642
      %v644 = vpop.f32.mrb[0].mxu0
      %v645 = vadd.f32 0.0, %v644
      %v646 = vpop.f32.mrb[0].mxu0
      %v647 = vpop.f32.mrb[0].mxu0
      %648 = vdwg.mxu0
      %v649 = vand.u32 2147483647, %v643
      %v650 = vand.u32 2147483647, %v645
      %651 = vmatprep.subr.mxu0 0.0
      %652 = vmatpush1.msra.mxu0 %v201
      %653 = vmatprep.subr.mxu0 0.0
      %654 = vmatpush1.msra.mxu0 %v202
      %655 = vmatprep.subr.mxu0 0.0
      %656 = vmatpush1.msra.mxu0 %v203
      %657 = vmatprep.subr.mxu0 0.0
      %658 = vmatpush1.msra.mxu0 %v204
      %659 = vmatprep.subr.mxu0 0.0
      %660 = vmatpush1.msra.mxu0 %v205
      %661 = vmatprep.subr.mxu0 0.0
      %662 = vmatpush1.msra.mxu0 %v206
      %663 = vmatprep.subr.mxu0 0.0
      %664 = vmatpush1.msra.mxu0 %v207
      %665 = vmatprep.subr.mxu0 0.0
      %666 = vmatpush1.msra.mxu0 %v208
      %667 = vmatprep.subr.mxu0 0.0
      %668 = vmatpush1.msra.mxu0 %v209
      %669 = vmatprep.subr.mxu0 0.0
      %670 = vmatpush1.msra.mxu0 %v210
      %671 = vmatprep.subr.mxu0 0.0
      %672 = vmatpush1.msra.mxu0 %v211
      %673 = vmatprep.subr.mxu0 0.0
      %674 = vmatpush1.msra.mxu0 %v212
      %675 = vmatprep.subr.mxu0 0.0
      %676 = vmatpush1.msra.mxu0 %v213
      %677 = vmatprep.subr.mxu0 0.0
      %678 = vmatpush1.msra.mxu0 %v214
      %679 = vmatprep.subr.mxu0 0.0
      %680 = vmatpush1.msra.mxu0 %v215
      %681 = vmatprep.subr.mxu0 0.0
      %682 = vmatpush1.msra.mxu0 %v216
      %683 = vmatprep.subr.mxu0 0.0
      %684 = vmatpush1.msra.mxu0 %v217
      %685 = vmatprep.subr.mxu0 0.0
      %686 = vmatpush1.msra.mxu0 %v218
      %687 = vmatprep.subr.mxu0 0.0
      %688 = vmatpush1.msra.mxu0 %v219
      %689 = vmatprep.subr.mxu0 0.0
      %690 = vmatpush1.msra.mxu0 %v220
      %691 = vmatprep.subr.mxu0 0.0
      %692 = vmatpush1.msra.mxu0 %v221
      %693 = vmatprep.subr.mxu0 0.0
      %694 = vmatpush1.msra.mxu0 %v222
      %695 = vmatprep.subr.mxu0 0.0
      %696 = vmatpush1.msra.mxu0 %v223
      %697 = vmatprep.subr.mxu0 0.0
      %698 = vmatpush1.msra.mxu0 %v224
      %699 = vmatprep.subr.mxu0 0.0
      %700 = vmatpush1.msra.mxu0 %v225
      %701 = vmatprep.subr.mxu0 0.0
      %702 = vmatpush1.msra.mxu0 %v226
      %703 = vmatprep.subr.mxu0 0.0
      %704 = vmatpush1.msra.mxu0 %v227
      %705 = vmatprep.subr.mxu0 0.0
      %706 = vmatpush1.msra.mxu0 %v228
      %707 = vmatprep.subr.mxu0 0.0
      %708 = vmatpush1.msra.mxu0 %v229
      %709 = vmatprep.subr.mxu0 0.0
      %710 = vmatpush1.msra.mxu0 %v230
      %711 = vmatprep.subr.mxu0 0.0
      %712 = vmatpush1.msra.mxu0 %v231
      %713 = vmatprep.subr.mxu0 0.0
      %714 = vmatpush1.msra.mxu0 %v232
      %715 = vmatprep.mubr.f32.mxu0 %v604
      %716 = vmatmul.mubr.f32.gmra.mrb[0].mxu0 %v602
      %v717 = vpop.f32.mrb[0].mxu0
      %v718 = vadd.f32 0.0, %v717
      %v719 = vpop.f32.mrb[0].mxu0
      %720 = vdwg.mxu0
      %721 = vmatprep.subr.mxu0 0.0
      %722 = vmatpush1.msra.mxu0 %v201
      %723 = vmatprep.subr.mxu0 0.0
      %724 = vmatpush1.msra.mxu0 %v202
      %725 = vmatprep.subr.mxu0 0.0
      %726 = vmatpush1.msra.mxu0 %v203
      %727 = vmatprep.subr.mxu0 0.0
      %728 = vmatpush1.msra.mxu0 %v204
      %729 = vmatprep.subr.mxu0 0.0
      %730 = vmatpush1.msra.mxu0 %v205
      %731 = vmatprep.subr.mxu0 0.0
      %732 = vmatpush1.msra.mxu0 %v206
      %733 = vmatprep.subr.mxu0 0.0
      %734 = vmatpush1.msra.mxu0 %v207
      %735 = vmatprep.subr.mxu0 0.0
      %736 = vmatpush1.msra.mxu0 %v208
      %737 = vmatprep.subr.mxu0 0.0
      %738 = vmatpush1.msra.mxu0 %v209
      %739 = vmatprep.subr.mxu0 0.0
      %740 = vmatpush1.msra.mxu0 %v210
      %741 = vmatprep.subr.mxu0 0.0
      %742 = vmatpush1.msra.mxu0 %v211
      %743 = vmatprep.subr.mxu0 0.0
      %744 = vmatpush1.msra.mxu0 %v212
      %745 = vmatprep.subr.mxu0 0.0
      %746 = vmatpush1.msra.mxu0 %v213
      %747 = vmatprep.subr.mxu0 0.0
      %748 = vmatpush1.msra.mxu0 %v214
      %749 = vmatprep.subr.mxu0 0.0
      %750 = vmatpush1.msra.mxu0 %v215
      %751 = vmatprep.subr.mxu0 0.0
      %752 = vmatpush1.msra.mxu0 %v216
      %753 = vmatprep.subr.mxu0 0.0
      %754 = vmatpush1.msra.mxu0 %v217
      %755 = vmatprep.subr.mxu0 0.0
      %756 = vmatpush1.msra.mxu0 %v218
      %757 = vmatprep.subr.mxu0 0.0
      %758 = vmatpush1.msra.mxu0 %v219
      %759 = vmatprep.subr.mxu0 0.0
      %760 = vmatpush1.msra.mxu0 %v220
      %761 = vmatprep.subr.mxu0 0.0
      %762 = vmatpush1.msra.mxu0 %v221
      %763 = vmatprep.subr.mxu0 0.0
      %764 = vmatpush1.msra.mxu0 %v222
      %765 = vmatprep.subr.mxu0 0.0
      %766 = vmatpush1.msra.mxu0 %v223
      %767 = vmatprep.subr.mxu0 0.0
      %768 = vmatpush1.msra.mxu0 %v224
      %769 = vmatprep.subr.mxu0 0.0
      %770 = vmatpush1.msra.mxu0 %v225
      %771 = vmatprep.subr.mxu0 0.0
      %772 = vmatpush1.msra.mxu0 %v226
      %773 = vmatprep.subr.mxu0 0.0
      %774 = vmatpush1.msra.mxu0 %v227
      %775 = vmatprep.subr.mxu0 0.0
      %776 = vmatpush1.msra.mxu0 %v228
      %777 = vmatprep.subr.mxu0 0.0
      %778 = vmatpush1.msra.mxu0 %v229
      %779 = vmatprep.subr.mxu0 0.0
      %780 = vmatpush1.msra.mxu0 %v230
      %781 = vmatprep.subr.mxu0 0.0
      %782 = vmatpush1.msra.mxu0 %v231
      %783 = vmatprep.subr.mxu0 0.0
      %784 = vmatpush1.msra.mxu0 %v232
      %785 = vmatprep.mubr.f32.mxu0 %v650
      %786 = vmatmul.mubr.f32.gmra.mrb[0].mxu0 %v649
      %v787 = vpop.f32.mrb[0].mxu0
      %v788 = vadd.f32 0.0, %v787
      %v789 = vpop.f32.mrb[0].mxu0
      %790 = vdwg.mxu0
      %792 = vrot.lane.b32.xlu0 %v718, 16
      %v793 = vpop.permute.xlu0 %792
      %vm795 = vcmask 254080
      %796 = vst.msk [vmem:[%s197] sm:$0x1] %vm795, %v793
      %798 = vrot.lane.b32.xlu0 %v788, 16
      %v799 = vpop.permute.xlu0 %798
      %vm801 = vcmask 261248
      %802 = vst.msk [vmem:[%s197 + $0x1] sm:$0xff] %vm801, %v799
      %v803 = vld [vmem:[%s192 + $0x10] sm:$0xff]
      %v804 = vld [vmem:[%s192 + $0x30] sm:$0xff]
      %v805 = vld [vmem:[%s192 + $0x50] sm:$0xff]
      %v806 = vld [vmem:[%s192 + $0x70] sm:$0xff]
      %v807 = vld [vmem:[%s192 + $0x90] sm:$0xff]
      %v808 = vld [vmem:[%s192 + $0xb0] sm:$0xff]
      %v809 = vld [vmem:[%s192 + $0xd0] sm:$0x11]
      %v817 = vunpack.c.l.b16 %v803
      %v818 = vunpack.c.h.b16 %v803
      %v819 = vunpack.c.l.b16 %v804
      %v820 = vunpack.c.h.b16 %v804
      %v821 = vunpack.c.l.b16 %v805
      %v822 = vunpack.c.h.b16 %v805
      %v823 = vunpack.c.l.b16 %v806
      %v824 = vunpack.c.h.b16 %v806
      %v825 = vunpack.c.l.b16 %v807
      %v826 = vunpack.c.h.b16 %v807
      %v827 = vunpack.c.l.b16 %v808
      %v828 = vunpack.c.h.b16 %v808
      %v829 = vunpack.c.l.b16 %v809
      %v830 = vunpack.c.h.b16 %v809
      %v831 = vpack.c.b16 %v819, %v817
      %v832 = vpack.c.b16 %v820, %v818
      %v833 = vpack.c.b16 %v823, %v821
      %v834 = vpack.c.b16 %v824, %v822
      %v835 = vpack.c.b16 %v827, %v825
      %v836 = vpack.c.b16 %v828, %v826
      %v837 = vpack.c.b16 %v829, %v829
      %v838 = vpack.c.b16 %v830, %v830
      %v846 = vand.u32 %v837, %v281
      %v849 = vand.u32 %v838, %v281
      %851 = vmatprep.subr.bf16.mxu0 %v832
      %852 = vmatpush1.bf16.msra.mxu0 %v831
      %853 = vmatprep.subr.bf16.mxu0 %v834
      %854 = vmatpush1.bf16.msra.mxu0 %v833
      %855 = vmatprep.subr.bf16.mxu0 %v836
      %856 = vmatpush1.bf16.msra.mxu0 %v835
      %857 = vmatprep.subr.bf16.mxu0 %v849
      %858 = vmatpush1.bf16.msra.mxu0 %v846
      %859 = vmatprep.subr.bf16.mxu0 0
      %860 = vmatpush1.bf16.msra.mxu0 0
      %861 = vmatprep.subr.bf16.mxu0 0
      %862 = vmatpush1.bf16.msra.mxu0 0
      %863 = vmatprep.subr.bf16.mxu0 0
      %864 = vmatpush1.bf16.msra.mxu0 0
      %865 = vmatprep.subr.bf16.mxu0 0
      %866 = vmatpush1.bf16.msra.mxu0 0
      %867 = vmatprep.subr.bf16.mxu0 0
      %868 = vmatpush1.bf16.msra.mxu0 0
      %869 = vmatprep.subr.bf16.mxu0 0
      %870 = vmatpush1.bf16.msra.mxu0 0
      %871 = vmatprep.subr.bf16.mxu0 0
      %872 = vmatpush1.bf16.msra.mxu0 0
      %873 = vmatprep.subr.bf16.mxu0 0
      %874 = vmatpush1.bf16.msra.mxu0 0
      %875 = vmatprep.subr.bf16.mxu0 0
      %876 = vmatpush1.bf16.msra.mxu0 0
      %877 = vmatprep.subr.bf16.mxu0 0
      %878 = vmatpush1.bf16.msra.mxu0 0
      %879 = vmatprep.subr.bf16.mxu0 0
      %880 = vmatpush1.bf16.msra.mxu0 0
      %881 = vmatprep.subr.bf16.mxu0 0
      %882 = vmatpush1.bf16.msra.mxu0 0
      %883 = vmatprep.mubr.bf16.mxu0 0
      %884 = vmatmul.mubr.bf16.gmra.mrb[0].mxu0 %v277
      %v885 = vpop.f32.mrb[0].mxu0
      %v886 = vadd.f32 0.0, %v885
      %v887 = vpop.f32.mrb[0].mxu0
      %v888 = vadd.f32 0.0, %v887
      %v889 = vpop.f32.mrb[0].mxu0
      %v890 = vpop.f32.mrb[0].mxu0
      %891 = vdwg.mxu0
      %892 = vmatprep.subr.bf16.mxu0 %v832
      %893 = vmatpush1.bf16.msra.mxu0 %v831
      %894 = vmatprep.subr.bf16.mxu0 %v834
      %895 = vmatpush1.bf16.msra.mxu0 %v833
      %896 = vmatprep.subr.bf16.mxu0 %v836
      %897 = vmatpush1.bf16.msra.mxu0 %v835
      %898 = vmatprep.subr.bf16.mxu0 %v849
      %899 = vmatpush1.bf16.msra.mxu0 %v846
      %900 = vmatprep.subr.bf16.mxu0 0
      %901 = vmatpush1.bf16.msra.mxu0 0
      %902 = vmatprep.subr.bf16.mxu0 0
      %903 = vmatpush1.bf16.msra.mxu0 0
      %904 = vmatprep.subr.bf16.mxu0 0
      %905 = vmatpush1.bf16.msra.mxu0 0
      %906 = vmatprep.subr.bf16.mxu0 0
      %907 = vmatpush1.bf16.msra.mxu0 0
      %908 = vmatprep.subr.bf16.mxu0 0
      %909 = vmatpush1.bf16.msra.mxu0 0
      %910 = vmatprep.subr.bf16.mxu0 0
      %911 = vmatpush1.bf16.msra.mxu0 0
      %912 = vmatprep.subr.bf16.mxu0 0
      %913 = vmatpush1.bf16.msra.mxu0 0
      %914 = vmatprep.subr.bf16.mxu0 0
      %915 = vmatpush1.bf16.msra.mxu0 0
      %916 = vmatprep.subr.bf16.mxu0 0
      %917 = vmatpush1.bf16.msra.mxu0 0
      %918 = vmatprep.subr.bf16.mxu0 0
      %919 = vmatpush1.bf16.msra.mxu0 0
      %920 = vmatprep.subr.bf16.mxu0 0
      %921 = vmatpush1.bf16.msra.mxu0 0
      %922 = vmatprep.subr.bf16.mxu0 0
      %923 = vmatpush1.bf16.msra.mxu0 0
      %924 = vmatprep.mubr.bf16.mxu0 0
      %925 = vmatmul.mubr.bf16.gmra.mrb[0].mxu0 %v330
      %v926 = vpop.f32.mrb[0].mxu0
      %v927 = vadd.f32 0.0, %v926
      %v928 = vpop.f32.mrb[0].mxu0
      %v929 = vadd.f32 0.0, %v928
      %v930 = vpop.f32.mrb[0].mxu0
      %v931 = vpop.f32.mrb[0].mxu0
      %932 = vdwg.mxu0
      %v933 = vand.u32 2147483647, %v927
      %v934 = vand.u32 2147483647, %v929
      %935 = vmatprep.subr.mxu0 0.0
      %936 = vmatpush1.msra.mxu0 %v201
      %937 = vmatprep.subr.mxu0 0.0
      %938 = vmatpush1.msra.mxu0 %v202
      %939 = vmatprep.subr.mxu0 0.0
      %940 = vmatpush1.msra.mxu0 %v203
      %941 = vmatprep.subr.mxu0 0.0
      %942 = vmatpush1.msra.mxu0 %v204
      %943 = vmatprep.subr.mxu0 0.0
      %944 = vmatpush1.msra.mxu0 %v205
      %945 = vmatprep.subr.mxu0 0.0
      %946 = vmatpush1.msra.mxu0 %v206
      %947 = vmatprep.subr.mxu0 0.0
      %948 = vmatpush1.msra.mxu0 %v207
      %949 = vmatprep.subr.mxu0 0.0
      %950 = vmatpush1.msra.mxu0 %v208
      %951 = vmatprep.subr.mxu0 0.0
      %952 = vmatpush1.msra.mxu0 %v209
      %953 = vmatprep.subr.mxu0 0.0
      %954 = vmatpush1.msra.mxu0 %v210
      %955 = vmatprep.subr.mxu0 0.0
      %956 = vmatpush1.msra.mxu0 %v211
      %957 = vmatprep.subr.mxu0 0.0
      %958 = vmatpush1.msra.mxu0 %v212
      %959 = vmatprep.subr.mxu0 0.0
      %960 = vmatpush1.msra.mxu0 %v213
      %961 = vmatprep.subr.mxu0 0.0
      %962 = vmatpush1.msra.mxu0 %v214
      %963 = vmatprep.subr.mxu0 0.0
      %964 = vmatpush1.msra.mxu0 %v215
      %965 = vmatprep.subr.mxu0 0.0
      %966 = vmatpush1.msra.mxu0 %v216
      %967 = vmatprep.subr.mxu0 0.0
      %968 = vmatpush1.msra.mxu0 %v217
      %969 = vmatprep.subr.mxu0 0.0
      %970 = vmatpush1.msra.mxu0 %v218
      %971 = vmatprep.subr.mxu0 0.0
      %972 = vmatpush1.msra.mxu0 %v219
      %973 = vmatprep.subr.mxu0 0.0
      %974 = vmatpush1.msra.mxu0 %v220
      %975 = vmatprep.subr.mxu0 0.0
      %976 = vmatpush1.msra.mxu0 %v221
      %977 = vmatprep.subr.mxu0 0.0
      %978 = vmatpush1.msra.mxu0 %v222
      %979 = vmatprep.subr.mxu0 0.0
      %980 = vmatpush1.msra.mxu0 %v223
      %981 = vmatprep.subr.mxu0 0.0
      %982 = vmatpush1.msra.mxu0 %v224
      %983 = vmatprep.subr.mxu0 0.0
      %984 = vmatpush1.msra.mxu0 %v225
      %985 = vmatprep.subr.mxu0 0.0
      %986 = vmatpush1.msra.mxu0 %v226
      %987 = vmatprep.subr.mxu0 0.0
      %988 = vmatpush1.msra.mxu0 %v227
      %989 = vmatprep.subr.mxu0 0.0
      %990 = vmatpush1.msra.mxu0 %v228
      %991 = vmatprep.subr.mxu0 0.0
      %992 = vmatpush1.msra.mxu0 %v229
      %993 = vmatprep.subr.mxu0 0.0
      %994 = vmatpush1.msra.mxu0 %v230
      %995 = vmatprep.subr.mxu0 0.0
      %996 = vmatpush1.msra.mxu0 %v231
      %997 = vmatprep.subr.mxu0 0.0
      %998 = vmatpush1.msra.mxu0 %v232
      %999 = vmatprep.mubr.f32.mxu0 %v888
      %1000 = vmatmul.mubr.f32.gmra.mrb[0].mxu0 %v886
      %v1001 = vpop.f32.mrb[0].mxu0
      %v1002 = vadd.f32 0.0, %v1001
      %v1003 = vpop.f32.mrb[0].mxu0
      %1004 = vdwg.mxu0
      %1005 = vmatprep.subr.mxu0 0.0
      %1006 = vmatpush1.msra.mxu0 %v201
      %1007 = vmatprep.subr.mxu0 0.0
      %1008 = vmatpush1.msra.mxu0 %v202
      %1009 = vmatprep.subr.mxu0 0.0
      %1010 = vmatpush1.msra.mxu0 %v203
      %1011 = vmatprep.subr.mxu0 0.0
      %1012 = vmatpush1.msra.mxu0 %v204
      %1013 = vmatprep.subr.mxu0 0.0
      %1014 = vmatpush1.msra.mxu0 %v205
      %1015 = vmatprep.subr.mxu0 0.0
      %1016 = vmatpush1.msra.mxu0 %v206
      %1017 = vmatprep.subr.mxu0 0.0
      %1018 = vmatpush1.msra.mxu0 %v207
      %1019 = vmatprep.subr.mxu0 0.0
      %1020 = vmatpush1.msra.mxu0 %v208
      %1021 = vmatprep.subr.mxu0 0.0
      %1022 = vmatpush1.msra.mxu0 %v209
      %1023 = vmatprep.subr.mxu0 0.0
      %1024 = vmatpush1.msra.mxu0 %v210
      %1025 = vmatprep.subr.mxu0 0.0
      %1026 = vmatpush1.msra.mxu0 %v211
      %1027 = vmatprep.subr.mxu0 0.0
      %1028 = vmatpush1.msra.mxu0 %v212
      %1029 = vmatprep.subr.mxu0 0.0
      %1030 = vmatpush1.msra.mxu0 %v213
      %1031 = vmatprep.subr.mxu0 0.0
      %1032 = vmatpush1.msra.mxu0 %v214
      %1033 = vmatprep.subr.mxu0 0.0
      %1034 = vmatpush1.msra.mxu0 %v215
      %1035 = vmatprep.subr.mxu0 0.0
      %1036 = vmatpush1.msra.mxu0 %v216
      %1037 = vmatprep.subr.mxu0 0.0
      %1038 = vmatpush1.msra.mxu0 %v217
      %1039 = vmatprep.subr.mxu0 0.0
      %1040 = vmatpush1.msra.mxu0 %v218
      %1041 = vmatprep.subr.mxu0 0.0
      %1042 = vmatpush1.msra.mxu0 %v219
      %1043 = vmatprep.subr.mxu0 0.0
      %1044 = vmatpush1.msra.mxu0 %v220
      %1045 = vmatprep.subr.mxu0 0.0
      %1046 = vmatpush1.msra.mxu0 %v221
      %1047 = vmatprep.subr.mxu0 0.0
      %1048 = vmatpush1.msra.mxu0 %v222
      %1049 = vmatprep.subr.mxu0 0.0
      %1050 = vmatpush1.msra.mxu0 %v223
      %1051 = vmatprep.subr.mxu0 0.0
      %1052 = vmatpush1.msra.mxu0 %v224
      %1053 = vmatprep.subr.mxu0 0.0
      %1054 = vmatpush1.msra.mxu0 %v225
      %1055 = vmatprep.subr.mxu0 0.0
      %1056 = vmatpush1.msra.mxu0 %v226
      %1057 = vmatprep.subr.mxu0 0.0
      %1058 = vmatpush1.msra.mxu0 %v227
      %1059 = vmatprep.subr.mxu0 0.0
      %1060 = vmatpush1.msra.mxu0 %v228
      %1061 = vmatprep.subr.mxu0 0.0
      %1062 = vmatpush1.msra.mxu0 %v229
      %1063 = vmatprep.subr.mxu0 0.0
      %1064 = vmatpush1.msra.mxu0 %v230
      %1065 = vmatprep.subr.mxu0 0.0
      %1066 = vmatpush1.msra.mxu0 %v231
      %1067 = vmatprep.subr.mxu0 0.0
      %1068 = vmatpush1.msra.mxu0 %v232
      %1069 = vmatprep.mubr.f32.mxu0 %v934
      %1070 = vmatmul.mubr.f32.gmra.mrb[0].mxu0 %v933
      %v1071 = vpop.f32.mrb[0].mxu0
      %v1072 = vadd.f32 0.0, %v1071
      %v1073 = vpop.f32.mrb[0].mxu0
      %1074 = vdwg.mxu0
      %1076 = vrot.lane.b32.xlu0 %v1002, 32
      %v1077 = vpop.permute.xlu0 %1076
      %vm1079 = vcmask 385280
      %1080 = vst.msk [vmem:[%s197] sm:$0x1] %vm1079, %v1077
      %1082 = vrot.lane.b32.xlu0 %v1072, 32
      %v1083 = vpop.permute.xlu0 %1082
      %vm1085 = vcmask 392448
      %1086 = vst.msk [vmem:[%s197 + $0x1] sm:$0xff] %vm1085, %v1083
      %v1087 = vld [vmem:[%s192 + $0x18] sm:$0xff]
      %v1088 = vld [vmem:[%s192 + $0x38] sm:$0xff]
      %v1089 = vld [vmem:[%s192 + $0x58] sm:$0xff]
      %v1090 = vld [vmem:[%s192 + $0x78] sm:$0xff]
      %v1091 = vld [vmem:[%s192 + $0x98] sm:$0xff]
      %v1092 = vld [vmem:[%s192 + $0xb8] sm:$0xff]
      %v1093 = vld [vmem:[%s192 + $0xd8] sm:$0x11]
      %v1101 = vunpack.c.l.b16 %v1087
      %v1102 = vunpack.c.h.b16 %v1087
      %v1103 = vunpack.c.l.b16 %v1088
      %v1104 = vunpack.c.h.b16 %v1088
      %v1105 = vunpack.c.l.b16 %v1089
      %v1106 = vunpack.c.h.b16 %v1089
      %v1107 = vunpack.c.l.b16 %v1090
      %v1108 = vunpack.c.h.b16 %v1090
      %v1109 = vunpack.c.l.b16 %v1091
      %v1110 = vunpack.c.h.b16 %v1091
      %v1111 = vunpack.c.l.b16 %v1092
      %v1112 = vunpack.c.h.b16 %v1092
      %v1113 = vunpack.c.l.b16 %v1093
      %v1114 = vunpack.c.h.b16 %v1093
      %v1115 = vpack.c.b16 %v1103, %v1101
      %v1116 = vpack.c.b16 %v1104, %v1102
      %v1117 = vpack.c.b16 %v1107, %v1105
      %v1118 = vpack.c.b16 %v1108, %v1106
      %v1119 = vpack.c.b16 %v1111, %v1109
      %v1120 = vpack.c.b16 %v1112, %v1110
      %v1121 = vpack.c.b16 %v1113, %v1113
      %v1122 = vpack.c.b16 %v1114, %v1114
      %v1130 = vand.u32 %v1121, %v281
      %v1133 = vand.u32 %v1122, %v281
      %1135 = vmatprep.subr.bf16.mxu0 %v1116
      %1136 = vmatpush1.bf16.msra.mxu0 %v1115
      %1137 = vmatprep.subr.bf16.mxu0 %v1118
      %1138 = vmatpush1.bf16.msra.mxu0 %v1117
      %1139 = vmatprep.subr.bf16.mxu0 %v1120
      %1140 = vmatpush1.bf16.msra.mxu0 %v1119
      %1141 = vmatprep.subr.bf16.mxu0 %v1133
      %1142 = vmatpush1.bf16.msra.mxu0 %v1130
      %1143 = vmatprep.subr.bf16.mxu0 0
      %1144 = vmatpush1.bf16.msra.mxu0 0
      %1145 = vmatprep.subr.bf16.mxu0 0
      %1146 = vmatpush1.bf16.msra.mxu0 0
      %1147 = vmatprep.subr.bf16.mxu0 0
      %1148 = vmatpush1.bf16.msra.mxu0 0
      %1149 = vmatprep.subr.bf16.mxu0 0
      %1150 = vmatpush1.bf16.msra.mxu0 0
      %1151 = vmatprep.subr.bf16.mxu0 0
      %1152 = vmatpush1.bf16.msra.mxu0 0
      %1153 = vmatprep.subr.bf16.mxu0 0
      %1154 = vmatpush1.bf16.msra.mxu0 0
      %1155 = vmatprep.subr.bf16.mxu0 0
      %1156 = vmatpush1.bf16.msra.mxu0 0
      %1157 = vmatprep.subr.bf16.mxu0 0
      %1158 = vmatpush1.bf16.msra.mxu0 0
      %1159 = vmatprep.subr.bf16.mxu0 0
      %1160 = vmatpush1.bf16.msra.mxu0 0
      %1161 = vmatprep.subr.bf16.mxu0 0
      %1162 = vmatpush1.bf16.msra.mxu0 0
      %1163 = vmatprep.subr.bf16.mxu0 0
      %1164 = vmatpush1.bf16.msra.mxu0 0
      %1165 = vmatprep.subr.bf16.mxu0 0
      %1166 = vmatpush1.bf16.msra.mxu0 0
      %1167 = vmatprep.mubr.bf16.mxu0 0
      %1168 = vmatmul.mubr.bf16.gmra.mrb[0].mxu0 %v277
      %v1169 = vpop.f32.mrb[0].mxu0
      %v1170 = vadd.f32 0.0, %v1169
      %v1171 = vpop.f32.mrb[0].mxu0
      %v1172 = vadd.f32 0.0, %v1171
      %v1173 = vpop.f32.mrb[0].mxu0
      %v1174 = vpop.f32.mrb[0].mxu0
      %1175 = vdwg.mxu0
      %1176 = vmatprep.subr.bf16.mxu0 %v1116
      %1177 = vmatpush1.bf16.msra.mxu0 %v1115
      %1178 = vmatprep.subr.bf16.mxu0 %v1118
      %1179 = vmatpush1.bf16.msra.mxu0 %v1117
      %1180 = vmatprep.subr.bf16.mxu0 %v1120
      %1181 = vmatpush1.bf16.msra.mxu0 %v1119
      %1182 = vmatprep.subr.bf16.mxu0 %v1133
      %1183 = vmatpush1.bf16.msra.mxu0 %v1130
      %1184 = vmatprep.subr.bf16.mxu0 0
      %1185 = vmatpush1.bf16.msra.mxu0 0
      %1186 = vmatprep.subr.bf16.mxu0 0
      %1187 = vmatpush1.bf16.msra.mxu0 0
      %1188 = vmatprep.subr.bf16.mxu0 0
      %1189 = vmatpush1.bf16.msra.mxu0 0
      %1190 = vmatprep.subr.bf16.mxu0 0
      %1191 = vmatpush1.bf16.msra.mxu0 0
      %1192 = vmatprep.subr.bf16.mxu0 0
      %1193 = vmatpush1.bf16.msra.mxu0 0
      %1194 = vmatprep.subr.bf16.mxu0 0
      %1195 = vmatpush1.bf16.msra.mxu0 0
      %1196 = vmatprep.subr.bf16.mxu0 0
      %1197 = vmatpush1.bf16.msra.mxu0 0
      %1198 = vmatprep.subr.bf16.mxu0 0
      %1199 = vmatpush1.bf16.msra.mxu0 0
      %1200 = vmatprep.subr.bf16.mxu0 0
      %1201 = vmatpush1.bf16.msra.mxu0 0
      %1202 = vmatprep.subr.bf16.mxu0 0
      %1203 = vmatpush1.bf16.msra.mxu0 0
      %1204 = vmatprep.subr.bf16.mxu0 0
      %1205 = vmatpush1.bf16.msra.mxu0 0
      %1206 = vmatprep.subr.bf16.mxu0 0
      %1207 = vmatpush1.bf16.msra.mxu0 0
      %1208 = vmatprep.mubr.bf16.mxu0 0
      %1209 = vmatmul.mubr.bf16.gmra.mrb[0].mxu0 %v330
      %v1210 = vpop.f32.mrb[0].mxu0
      %v1211 = vadd.f32 0.0, %v1210
      %v1212 = vpop.f32.mrb[0].mxu0
      %v1213 = vadd.f32 0.0, %v1212
      %v1214 = vpop.f32.mrb[0].mxu0
      %v1215 = vpop.f32.mrb[0].mxu0
      %1216 = vdwg.mxu0
      %v1217 = vand.u32 2147483647, %v1211
      %v1218 = vand.u32 2147483647, %v1213
      %1219 = vmatprep.subr.mxu0 0.0
      %1220 = vmatpush1.msra.mxu0 %v201
      %1221 = vmatprep.subr.mxu0 0.0
      %1222 = vmatpush1.msra.mxu0 %v202
      %1223 = vmatprep.subr.mxu0 0.0
      %1224 = vmatpush1.msra.mxu0 %v203
      %1225 = vmatprep.subr.mxu0 0.0
      %1226 = vmatpush1.msra.mxu0 %v204
      %1227 = vmatprep.subr.mxu0 0.0
      %1228 = vmatpush1.msra.mxu0 %v205
      %1229 = vmatprep.subr.mxu0 0.0
      %1230 = vmatpush1.msra.mxu0 %v206
      %1231 = vmatprep.subr.mxu0 0.0
      %1232 = vmatpush1.msra.mxu0 %v207
      %1233 = vmatprep.subr.mxu0 0.0
      %1234 = vmatpush1.msra.mxu0 %v208
      %1235 = vmatprep.subr.mxu0 0.0
      %1236 = vmatpush1.msra.mxu0 %v209
      %1237 = vmatprep.subr.mxu0 0.0
      %1238 = vmatpush1.msra.mxu0 %v210
      %1239 = vmatprep.subr.mxu0 0.0
      %1240 = vmatpush1.msra.mxu0 %v211
      %1241 = vmatprep.subr.mxu0 0.0
      %1242 = vmatpush1.msra.mxu0 %v212
      %1243 = vmatprep.subr.mxu0 0.0
      %1244 = vmatpush1.msra.mxu0 %v213
      %1245 = vmatprep.subr.mxu0 0.0
      %1246 = vmatpush1.msra.mxu0 %v214
      %1247 = vmatprep.subr.mxu0 0.0
      %1248 = vmatpush1.msra.mxu0 %v215
      %1249 = vmatprep.subr.mxu0 0.0
      %1250 = vmatpush1.msra.mxu0 %v216
      %1251 = vmatprep.subr.mxu0 0.0
      %1252 = vmatpush1.msra.mxu0 %v217
      %1253 = vmatprep.subr.mxu0 0.0
      %1254 = vmatpush1.msra.mxu0 %v218
      %1255 = vmatprep.subr.mxu0 0.0
      %1256 = vmatpush1.msra.mxu0 %v219
      %1257 = vmatprep.subr.mxu0 0.0
      %1258 = vmatpush1.msra.mxu0 %v220
      %1259 = vmatprep.subr.mxu0 0.0
      %1260 = vmatpush1.msra.mxu0 %v221
      %1261 = vmatprep.subr.mxu0 0.0
      %1262 = vmatpush1.msra.mxu0 %v222
      %1263 = vmatprep.subr.mxu0 0.0
      %1264 = vmatpush1.msra.mxu0 %v223
      %1265 = vmatprep.subr.mxu0 0.0
      %1266 = vmatpush1.msra.mxu0 %v224
      %1267 = vmatprep.subr.mxu0 0.0
      %1268 = vmatpush1.msra.mxu0 %v225
      %1269 = vmatprep.subr.mxu0 0.0
      %1270 = vmatpush1.msra.mxu0 %v226
      %1271 = vmatprep.subr.mxu0 0.0
      %1272 = vmatpush1.msra.mxu0 %v227
      %1273 = vmatprep.subr.mxu0 0.0
      %1274 = vmatpush1.msra.mxu0 %v228
      %1275 = vmatprep.subr.mxu0 0.0
      %1276 = vmatpush1.msra.mxu0 %v229
      %1277 = vmatprep.subr.mxu0 0.0
      %1278 = vmatpush1.msra.mxu0 %v230
      %1279 = vmatprep.subr.mxu0 0.0
      %1280 = vmatpush1.msra.mxu0 %v231
      %1281 = vmatprep.subr.mxu0 0.0
      %1282 = vmatpush1.msra.mxu0 %v232
      %1283 = vmatprep.mubr.f32.mxu0 %v1172
      %1284 = vmatmul.mubr.f32.gmra.mrb[0].mxu0 %v1170
      %v1285 = vpop.f32.mrb[0].mxu0
      %v1286 = vadd.f32 0.0, %v1285
      %v1287 = vpop.f32.mrb[0].mxu0
      %1288 = vdwg.mxu0
      %1289 = vmatprep.subr.mxu0 0.0
      %1290 = vmatpush1.msra.mxu0 %v201
      %1291 = vmatprep.subr.mxu0 0.0
      %1292 = vmatpush1.msra.mxu0 %v202
      %1293 = vmatprep.subr.mxu0 0.0
      %1294 = vmatpush1.msra.mxu0 %v203
      %1295 = vmatprep.subr.mxu0 0.0
      %1296 = vmatpush1.msra.mxu0 %v204
      %1297 = vmatprep.subr.mxu0 0.0
      %1298 = vmatpush1.msra.mxu0 %v205
      %1299 = vmatprep.subr.mxu0 0.0
      %1300 = vmatpush1.msra.mxu0 %v206
      %1301 = vmatprep.subr.mxu0 0.0
      %1302 = vmatpush1.msra.mxu0 %v207
      %1303 = vmatprep.subr.mxu0 0.0
      %1304 = vmatpush1.msra.mxu0 %v208
      %1305 = vmatprep.subr.mxu0 0.0
      %1306 = vmatpush1.msra.mxu0 %v209
      %1307 = vmatprep.subr.mxu0 0.0
      %1308 = vmatpush1.msra.mxu0 %v210
      %1309 = vmatprep.subr.mxu0 0.0
      %1310 = vmatpush1.msra.mxu0 %v211
      %1311 = vmatprep.subr.mxu0 0.0
      %1312 = vmatpush1.msra.mxu0 %v212
      %1313 = vmatprep.subr.mxu0 0.0
      %1314 = vmatpush1.msra.mxu0 %v213
      %1315 = vmatprep.subr.mxu0 0.0
      %1316 = vmatpush1.msra.mxu0 %v214
      %1317 = vmatprep.subr.mxu0 0.0
      %1318 = vmatpush1.msra.mxu0 %v215
      %1319 = vmatprep.subr.mxu0 0.0
      %1320 = vmatpush1.msra.mxu0 %v216
      %1321 = vmatprep.subr.mxu0 0.0
      %1322 = vmatpush1.msra.mxu0 %v217
      %1323 = vmatprep.subr.mxu0 0.0
      %1324 = vmatpush1.msra.mxu0 %v218
      %1325 = vmatprep.subr.mxu0 0.0
      %1326 = vmatpush1.msra.mxu0 %v219
      %1327 = vmatprep.subr.mxu0 0.0
      %1328 = vmatpush1.msra.mxu0 %v220
      %1329 = vmatprep.subr.mxu0 0.0
      %1330 = vmatpush1.msra.mxu0 %v221
      %1331 = vmatprep.subr.mxu0 0.0
      %1332 = vmatpush1.msra.mxu0 %v222
      %1333 = vmatprep.subr.mxu0 0.0
      %1334 = vmatpush1.msra.mxu0 %v223
      %1335 = vmatprep.subr.mxu0 0.0
      %1336 = vmatpush1.msra.mxu0 %v224
      %1337 = vmatprep.subr.mxu0 0.0
      %1338 = vmatpush1.msra.mxu0 %v225
      %1339 = vmatprep.subr.mxu0 0.0
      %1340 = vmatpush1.msra.mxu0 %v226
      %1341 = vmatprep.subr.mxu0 0.0
      %1342 = vmatpush1.msra.mxu0 %v227
      %1343 = vmatprep.subr.mxu0 0.0
      %1344 = vmatpush1.msra.mxu0 %v228
      %1345 = vmatprep.subr.mxu0 0.0
      %1346 = vmatpush1.msra.mxu0 %v229
      %1347 = vmatprep.subr.mxu0 0.0
      %1348 = vmatpush1.msra.mxu0 %v230
      %1349 = vmatprep.subr.mxu0 0.0
      %1350 = vmatpush1.msra.mxu0 %v231
      %1351 = vmatprep.subr.mxu0 0.0
      %1352 = vmatpush1.msra.mxu0 %v232
      %1353 = vmatprep.mubr.f32.mxu0 %v1218
      %1354 = vmatmul.mubr.f32.gmra.mrb[0].mxu0 %v1217
      %v1355 = vpop.f32.mrb[0].mxu0
      %v1356 = vadd.f32 0.0, %v1355
      %v1357 = vpop.f32.mrb[0].mxu0
      %1358 = vdwg.mxu0
      %1360 = vrot.lane.b32.xlu0 %v1286, 48
      %v1361 = vpop.permute.xlu0 %1360
      %vm1363 = vcmask 516480
      %1364 = vst.msk [vmem:[%s197] sm:$0x1] %vm1363, %v1361
      %1366 = vrot.lane.b32.xlu0 %v1356, 48
      %v1367 = vpop.permute.xlu0 %1366
      %vm1369 = vcmask 523648
      %1370 = vst.msk [vmem:[%s197 + $0x1] sm:$0xff] %vm1369, %v1367
      %p1371 = scmp.lt.s32.totalorder %s15, 1
      %s1372 = scalar_select %p1371, %s15, 1
      %s1373 = smul.addr %s1372, 2
      %s1374 = smul.addr %s1373, 8
      %s1375 = scalar_lea.vmem %s4, %s1374
      // Predicated region
      $region37: #{tpu_custom_call.1} parent=35 // pred_check
        %p1376 = pneg %p122
      $region38: #{tpu_custom_call.1} parent=35 // pred_check_branch
        %1378 = sbr.rel (%p1376) target = $region40
      $region39: #{tpu_custom_call.1} parent=35 // pred_region
        _
      $region40: #{tpu_custom_call.1} parent=35 // pred_fallthru
        _
    $region36: #{tpu_custom_call.1} parent=5 // pred_fallthru
      _
    %p1379 = scmp.le.s32.totalorder 2, %s10
    // Predicated region
    $region41: #{tpu_custom_call.1} parent=5 // pred_check
      %p1380 = pneg %p1379
    $region42: #{tpu_custom_call.1} parent=5 // pred_check_branch
      %1382 = sbr.rel (%p1380) target = $region44
    $region43: #{tpu_custom_call.1} parent=5 // pred_region
      %s1383 = ssub.s32 %s10, 2
      // Predicated region
      $region45: #{tpu_custom_call.1} parent=43 // pred_check
        %p1384 = pneg %p128
      $region46: #{tpu_custom_call.1} parent=43 // pred_check_branch
        %1386 = sbr.rel (%p1384) target = $region48
      $region47: #{tpu_custom_call.1} parent=43 // pred_region
        %p1387 = scmp.lt.s32.totalorder %s16, 1
        %s1388 = scalar_select %p1387, %s16, 1
        %s1389 = smul.addr %s1388, 2
        %s1390 = smul.addr %s1389, 8
        %s1391 = scalar_lea.vmem %s4, %s1390
      $region48: #{tpu_custom_call.1} parent=43 // pred_fallthru
        _
    $region44: #{tpu_custom_call.1} parent=5 // pred_fallthru
      _
  $region6: #{tpu_custom_call.1} parent=0 // loop_footer
    %s14 = sadd.s32 1, %s10
  $region7: #{tpu_custom_call.1} parent=0 // loop_footer_branch
    %9 = sbr.rel target = $region3
  $region8: #{tpu_custom_call.1} parent=0 // loop_exit
    _

</llo_original>
